<compile_context>
chip_gen: v7x
topology: tpu7x:2x2x1
jax: 0.10.0
libtpu: 0.0.40
codegen_flags: <defaults>
</compile_context>

<pallas_src>
import functools

import jax
import jax.numpy as jnp
from jax.experimental import pallas as pl
from jax.experimental.pallas import tpu as pltpu

EPS = 1e-16
MAX_TIME_TILE = 16   # unroll depth / time-chunk size cap


def _hmm_chunk_kernel(first_init, num_states, time_tile,
                      e_ref, sf0_ref, ll0_ref, a_ref,
                      out_ref, sf_ref, ll_ref):
    """One (model, time-chunk) grid step of the fused forward recursion.

    e_ref:   (TT, 1, B, S)    emission probs for this model / time chunk
    sf0_ref: (1, B, S)        initial scaled forward (resident per model)
    ll0_ref: (1, B, 1)        initial loglik (resident per model)
    a_ref:   (1, S, S)        dense transition matrix (resident per model)
    out_ref: (TT, 1, B, S+1)  per-step output [log(scaled_forward) | loglik]
    sf_ref:  (1, B, S)        running scaled forward (accumulator -> final state)
    ll_ref:  (1, B, 1)        running loglik (accumulator -> final state)
    """
    chunk = pl.program_id(1)

    # Load the carried state into the VMEM-resident output blocks at chunk == 0.
    @pl.when(chunk == 0)
    def _():
        sf_ref[...] = sf0_ref[...]
        ll_ref[...] = ll0_ref[...]

    a = a_ref[0]                                                 # (S, S), resident
    f = sf_ref[0]                                                # (B, S) carry
    ll = ll_ref[0]                                               # (B, 1) carry

    # Statically unrolled recursion over the time chunk; carry stays in vregs.
    for tt in range(time_tile):
        # transitioner: R[b, j] = sum_i f[b, i] * A[i, j]   (MXU, f32 accumulate)
        r = jnp.dot(f, a, preferred_element_type=jnp.float32)
        if first_init and tt == 0:
            # HmmCell.forward(init=True) at the global first position skips the
            # transition; only the very first step of chunk 0 is affected.
            r = jnp.where(chunk == 0, f, r)

        e = jnp.maximum(e_ref[tt, 0], EPS)                       # (B, S)
        sf = e * jnp.maximum(r, EPS)                             # (B, S)
        s_sum = jnp.sum(sf, axis=-1, keepdims=True)              # (B, 1)
        log_s = jnp.log(s_sum)
        ll = ll + log_s

        # EUP approximate reciprocal + one Newton step -> ~f32-accurate 1/s_sum.
        inv = pl.reciprocal(s_sum, approx=True)
        inv = inv * (2.0 - s_sum * inv)
        f = sf * inv                                             # next carry

        # Fused lane-dense per-step output: [log(scaled_forward) | loglik].
        # log(sf / s_sum) == log(sf) - log(s_sum): exact, independent of `inv`.
        out_ref[tt, 0, :, :num_states] = jnp.log(sf) - log_s
        out_ref[tt, 0, :, num_states:] = ll

    # Write back the carried state (revisited output blocks; HBM writeback only
    # happens when the model index changes).
    sf_ref[0] = f
    ll_ref[0] = ll


def _pick_time_tile(T, cap=MAX_TIME_TILE):
    """Largest divisor of T not exceeding `cap` (falls back to 1)."""
    tt = 1
    for d in range(1, min(cap, T) + 1):
        if T % d == 0:
            tt = d
    return tt


def hmm_cell_forward_sequence(emission_probs_seq, init_scaled_forward,
                              init_loglik, A, num_models, max_num_states,
                              first_init=True):
    """Fused forward DP over a whole sequence (q == 1, reverse=False).

    emission_probs_seq:  (T, num_models*batch, S) float32
    init_scaled_forward: (num_models*batch, S)    float32
    init_loglik:         (num_models*batch, 1)    float32
    A:                   (num_models, S, S)       float32

    Returns (outputs, [final_scaled_forward, final_loglik]) where outputs[t]
    equals the HmmCell.forward output at step t, shape (T, num_models*batch, S+1).
    """
    S = max_num_states
    T = emission_probs_seq.shape[0]
    B = emission_probs_seq.shape[1] // num_models
    E4 = emission_probs_seq.reshape(T, num_models, B, S)
    F3 = init_scaled_forward.reshape(num_models, B, S)
    L3 = init_loglik.reshape(num_models, B, 1)

    TT = _pick_time_tile(T)
    n_chunks = T // TT

    kernel = functools.partial(_hmm_chunk_kernel, first_init, S, TT)
    out_seq, sf_fin, ll_fin = pl.pallas_call(
        kernel,
        out_shape=(
            jax.ShapeDtypeStruct((T, num_models, B, S + 1), jnp.float32),
            jax.ShapeDtypeStruct((num_models, B, S), jnp.float32),
            jax.ShapeDtypeStruct((num_models, B, 1), jnp.float32),
        ),
        grid_spec=pltpu.PrefetchScalarGridSpec(
            num_scalar_prefetch=0,
            grid=(num_models, n_chunks),          # time-chunk axis last (arbitrary)
            in_specs=[
                # emission chunk: DMA'd per (model, chunk)
                pl.BlockSpec((TT, 1, B, S), lambda m, c: (c, m, 0, 0)),
                # initial state + A are loop-invariant over time: DMA once / model
                pl.BlockSpec((1, B, S), lambda m, c: (m, 0, 0)),
                pl.BlockSpec((1, B, 1), lambda m, c: (m, 0, 0)),
                pl.BlockSpec((1, S, S), lambda m, c: (m, 0, 0)),
            ],
            out_specs=(
                pl.BlockSpec((TT, 1, B, S + 1), lambda m, c: (c, m, 0, 0)),
                pl.BlockSpec((1, B, S), lambda m, c: (m, 0, 0)),   # state acc
                pl.BlockSpec((1, B, 1), lambda m, c: (m, 0, 0)),   # state acc
            ),
        ),
        compiler_params=pltpu.CompilerParams(
            dimension_semantics=("parallel", "arbitrary")),
    )(E4, F3, L3, A)

    # glue (views only): back to the PyTorch flat layout
    outputs = out_seq.reshape(T, num_models * B, S + 1)
    new_sf = sf_fin.reshape(num_models * B, S)
    new_ll = ll_fin.reshape(num_models * B, 1)
    # TODO(synk): when B*S*TT grows large, cap TT / add a batch grid axis so the
    # double-buffered emission+output chunks stay inside the scoped VMEM budget
    # (16/32 MiB default on v5e / v6e-v7x), and pack several models into the lane
    # axis (block-diagonal A) to fill 128 MXU columns when num_models is large.
    # TODO(synk): parallel_factor > 1 (q > 1) chunked-forward path and the
    # reverse (backward) recursion are not implemented in this kernel.
    return outputs, [new_sf, new_ll]


def hmm_cell_forward(emission_probs, old_scaled_forward, old_loglik, A,
                     num_models, max_num_states, init=False):
    """Single recursion step, matching HmmCell.forward (q == 1)."""
    outputs, state = hmm_cell_forward_sequence(
        emission_probs[None], old_scaled_forward, old_loglik, A,
        num_models, max_num_states, first_init=init)
    return outputs[0], state


# ----------------------- deterministic parameter setup -----------------------

def make_transition_matrix(key, num_models, S):
    logits = jax.random.normal(key, (num_models, S, S), dtype=jnp.float32)
    return jax.nn.softmax(logits, axis=-1)            # rows sum to 1


def make_initial_distribution(key, num_models, S):
    logits = jax.random.normal(key, (1, num_models, S), dtype=jnp.float32)
    return jax.nn.softmax(logits, axis=-1)            # (1, num_models, S)


def get_initial_state(init_dist, num_models, S, batch_size):
    # mirrors HmmCell.get_initial_state (parallel_factor == 1, reverse=False)
    d = jnp.tile(init_dist, (batch_size, 1, 1))       # (batch, num_models, S)
    d = jnp.transpose(d, (1, 0, 2)).reshape(-1, S)    # (num_models*batch, S)
    ll = jnp.zeros((num_models * batch_size, 1), jnp.float32)
    return [d, ll]


# ------------------------------ pure-JAX reference ----------------------------

def ref_step(E, F, L, A, num_models, S, init=False):
    E3 = E.reshape(num_models, -1, S)
    F3 = F.reshape(num_models, -1, S)
    L3 = L.reshape(num_models, -1, 1)
    if init:
        R = F3
    else:
        R = jnp.einsum('mbi,mij->mbj', F3, A,
                       precision=jax.lax.Precision.HIGHEST)
    Ec = jnp.maximum(E3, EPS)
    Rc = jnp.maximum(R, EPS)
    sf = Ec * Rc
    Ssum = jnp.sum(sf, axis=-1, keepdims=True)
    ll = L3 + jnp.log(Ssum)
    sf = sf / Ssum
    sf_flat = sf.reshape(-1, S)
    ll_flat = ll.reshape(-1, 1)
    out = jnp.concatenate([jnp.log(sf_flat), ll_flat], axis=-1)
    return out, [sf_flat, ll_flat]


def ref_sequence(E_seq, F, L, A, num_models, S, first_init=True):
    outs = []
    sf, ll = F, L
    for t in range(E_seq.shape[0]):
        out, (sf, ll) = ref_step(E_seq[t], sf, ll, A, num_models, S,
                                 init=(first_init and t == 0))
        outs.append(out)
    return jnp.stack(outs, axis=0), [sf, ll]


# ------------------------------------ main ------------------------------------

if __name__ == "__main__":
    num_models = 2
    num_states = [32, 32]          # per-model state counts
    max_num_states = max(num_states)
    batch = 8
    seq_len = 8

    key = jax.random.PRNGKey(0)
    k_a, k_pi, k_em = jax.random.split(key, 3)

    A = make_transition_matrix(k_a, num_models, max_num_states)
    init_dist = make_initial_distribution(k_pi, num_models, max_num_states)

    # emission probabilities for a whole sequence (as produced by the emitters)
    em_logits = jax.random.normal(
        k_em, (seq_len, num_models * batch, max_num_states), dtype=jnp.float32)
    emission_seq = jax.nn.softmax(em_logits, axis=-1)

    init_sf, init_ll = get_initial_state(
        init_dist, num_models, max_num_states, batch)

    # ---- fused full-sequence forward pass (the fast path) ----
    out_seq, (sf_T, ll_T) = hmm_cell_forward_sequence(
        emission_seq, init_sf, init_ll, A, num_models, max_num_states,
        first_init=True)
    jax.block_until_ready(out_seq)
    jax.block_until_ready(sf_T)
    jax.block_until_ready(ll_T)

    out_seq_ref, (sf_T_ref, ll_T_ref) = ref_sequence(
        emission_seq, init_sf, init_ll, A, num_models, max_num_states,
        first_init=True)

    assert out_seq.shape == (seq_len, num_models * batch, max_num_states + 1)
    assert sf_T.shape == (num_models * batch, max_num_states)
    assert ll_T.shape == (num_models * batch, 1)
    assert jnp.allclose(out_seq, out_seq_ref, rtol=1e-5, atol=1e-5)
    assert jnp.allclose(sf_T, sf_T_ref, rtol=1e-5, atol=1e-5)
    assert jnp.allclose(ll_T, ll_T_ref, rtol=1e-5, atol=1e-5)

    # ---- single-step parity with HmmCell.forward (init=False) ----
    out1, (sf1, ll1) = hmm_cell_forward(
        emission_seq[0], init_sf, init_ll, A, num_models, max_num_states,
        init=False)
    jax.block_until_ready(out1)

    out1_ref, (sf1_ref, ll1_ref) = ref_step(
        emission_seq[0], init_sf, init_ll, A, num_models, max_num_states,
        init=False)

    assert out1.shape == (num_models * batch, max_num_states + 1)
    assert jnp.allclose(out1, out1_ref, rtol=1e-5, atol=1e-5)
    assert jnp.allclose(sf1, sf1_ref, rtol=1e-5, atol=1e-5)
    assert jnp.allclose(ll1, ll1_ref, rtol=1e-5, atol=1e-5)

    print("KERNEL_OK")
</pallas_src>

<mosaic_0001>
module attributes {stable_mosaic.version = 11 : i64} {
  func.func @_hmm_chunk_kernel(%arg0: i32, %arg1: i32, %arg2: memref<8x1x8x32xf32, #tpu.memory_space<vmem>>, %arg3: memref<1x8x32xf32, #tpu.memory_space<vmem>>, %arg4: memref<1x8x1xf32, #tpu.memory_space<vmem>>, %arg5: memref<1x32x32xf32, #tpu.memory_space<vmem>>, %arg6: memref<8x1x8x33xf32, #tpu.memory_space<vmem>>, %arg7: memref<1x8x32xf32, #tpu.memory_space<vmem>>, %arg8: memref<1x8x1xf32, #tpu.memory_space<vmem>>) attributes {dimension_semantics = [#tpu.dimension_semantics<parallel>, #tpu.dimension_semantics<arbitrary>], iteration_bounds = array<i64: 2, 1>, scalar_prefetch = 0 : i64, scratch_operands = 0 : i64, tpu.core_type = #tpu.core_type<tc>, window_params = [{transform_indices = @transform_0, window_bounds = array<i64: 8, 1, 8, 32>}, {transform_indices = @transform_1, window_bounds = array<i64: 1, 8, 32>}, {transform_indices = @transform_2, window_bounds = array<i64: 1, 8, 1>}, {transform_indices = @transform_3, window_bounds = array<i64: 1, 32, 32>}, {transform_indices = @transform_4, window_bounds = array<i64: 8, 1, 8, 33>}, {transform_indices = @transform_5, window_bounds = array<i64: 1, 8, 32>}, {transform_indices = @transform_6, window_bounds = array<i64: 1, 8, 1>}]} {
    %c0_i32 = arith.constant 0 : i32
    %0 = arith.cmpi eq, %arg1, %c0_i32 : i32
    %1 = arith.extui %0 : i1 to i32
    %c0_i32_0 = arith.constant 0 : i32
    %2 = arith.cmpi ne, %1, %c0_i32_0 : i32
    scf.if %2 {
      %c0_143 = arith.constant 0 : index
      %c0_144 = arith.constant 0 : index
      %c0_145 = arith.constant 0 : index
      %241 = vector.load %arg3[%c0_143, %c0_144, %c0_145] : memref<1x8x32xf32, #tpu.memory_space<vmem>>, vector<1x8x32xf32>
      %c0_146 = arith.constant 0 : index
      %c0_147 = arith.constant 0 : index
      %c0_148 = arith.constant 0 : index
      %242 = vector.load %arg7[%c0_146, %c0_147, %c0_148] : memref<1x8x32xf32, #tpu.memory_space<vmem>>, vector<1x8x32xf32>
      tpu.vector_store %arg7[%c0_146, %c0_147, %c0_148], %241 {strides = array<i32>} : memref<1x8x32xf32, #tpu.memory_space<vmem>>, vector<1x8x32xf32>,
      %c0_149 = arith.constant 0 : index
      %c0_150 = arith.constant 0 : index
      %c0_151 = arith.constant 0 : index
      %243 = vector.load %arg4[%c0_149, %c0_150, %c0_151] : memref<1x8x1xf32, #tpu.memory_space<vmem>>, vector<1x8x1xf32>
      %c0_152 = arith.constant 0 : index
      %c0_153 = arith.constant 0 : index
      %c0_154 = arith.constant 0 : index
      %244 = vector.load %arg8[%c0_152, %c0_153, %c0_154] : memref<1x8x1xf32, #tpu.memory_space<vmem>>, vector<1x8x1xf32>
      tpu.vector_store %arg8[%c0_152, %c0_153, %c0_154], %243 {strides = array<i32>} : memref<1x8x1xf32, #tpu.memory_space<vmem>>, vector<1x8x1xf32>,
    } else {
    }
    %c0 = arith.constant 0 : index
    %c0_1 = arith.constant 0 : index
    %c0_2 = arith.constant 0 : index
    %3 = vector.load %arg5[%c0, %c0_1, %c0_2] : memref<1x32x32xf32, #tpu.memory_space<vmem>>, vector<1x32x32xf32>
    %4 = vector.shape_cast %3 : vector<1x32x32xf32> to vector<32x32xf32>
    %c0_3 = arith.constant 0 : index
    %c0_4 = arith.constant 0 : index
    %c0_5 = arith.constant 0 : index
    %5 = vector.load %arg7[%c0_3, %c0_4, %c0_5] : memref<1x8x32xf32, #tpu.memory_space<vmem>>, vector<1x8x32xf32>
    %6 = vector.shape_cast %5 : vector<1x8x32xf32> to vector<8x32xf32>
    %c0_6 = arith.constant 0 : index
    %c0_7 = arith.constant 0 : index
    %c0_8 = arith.constant 0 : index
    %7 = vector.load %arg8[%c0_6, %c0_7, %c0_8] : memref<1x8x1xf32, #tpu.memory_space<vmem>>, vector<1x8x1xf32>
    %8 = vector.shape_cast %7 : vector<1x8x1xf32> to vector<8x1xf32>
    %cst = arith.constant dense<0.000000e+00> : vector<8x32xf32>
    %9 = tpu.matmul %6, %4, %cst {dimension_numbers = #tpu.dot_dimension_numbers<[1], [0], [0], [1], [0, 0, 1, 1], [], []>} : vector<8x32xf32>, vector<32x32xf32>, vector<8x32xf32> -> vector<8x32xf32>
    %c0_i32_9 = arith.constant 0 : i32
    %10 = arith.cmpi eq, %arg1, %c0_i32_9 : i32
    %11 = arith.select %10, %6, %9 : vector<8x32xf32>
    %c0_10 = arith.constant 0 : index
    %c0_11 = arith.constant 0 : index
    %c0_12 = arith.constant 0 : index
    %c0_13 = arith.constant 0 : index
    %12 = vector.load %arg2[%c0_10, %c0_11, %c0_12, %c0_13] : memref<8x1x8x32xf32, #tpu.memory_space<vmem>>, vector<1x1x8x32xf32>
    %13 = vector.shape_cast %12 : vector<1x1x8x32xf32> to vector<8x32xf32>
    %cst_14 = arith.constant 1.000000e-16 : f32
    %14 = vector.broadcast %cst_14 : f32 to vector<8x32xf32>
    %15 = arith.maximumf %13, %14 : vector<8x32xf32>
    %cst_15 = arith.constant 1.000000e-16 : f32
    %16 = vector.broadcast %cst_15 : f32 to vector<8x32xf32>
    %17 = arith.maximumf %11, %16 : vector<8x32xf32>
    %18 = arith.mulf %15, %17 : vector<8x32xf32>
    %cst_16 = arith.constant dense<0.000000e+00> : vector<8xf32>
    %19 = vector.multi_reduction <add>, %18, %cst_16 [1] : vector<8x32xf32> to vector<8xf32>
    %20 = vector.shape_cast %19 : vector<8xf32> to vector<8x1xf32>
    %21 = math.log %20 : vector<8x1xf32>
    %22 = arith.addf %8, %21 : vector<8x1xf32>
    %23 = tpu.reciprocal %20 {approx = true} : vector<8x1xf32> -> vector<8x1xf32>
    %24 = arith.mulf %20, %23 : vector<8x1xf32>
    %cst_17 = arith.constant 2.000000e+00 : f32
    %25 = vector.broadcast %cst_17 : f32 to vector<8x1xf32>
    %26 = arith.subf %25, %24 : vector<8x1xf32>
    %27 = arith.mulf %23, %26 : vector<8x1xf32>
    %28 = vector.broadcast %27 : vector<8x1xf32> to vector<8x32xf32>
    %29 = arith.mulf %18, %28 : vector<8x32xf32>
    %30 = math.log %18 : vector<8x32xf32>
    %31 = vector.broadcast %21 : vector<8x1xf32> to vector<8x32xf32>
    %32 = arith.subf %30, %31 : vector<8x32xf32>
    %c0_18 = arith.constant 0 : index
    %c0_19 = arith.constant 0 : index
    %c0_20 = arith.constant 0 : index
    %c0_21 = arith.constant 0 : index
    %33 = vector.load %arg6[%c0_18, %c0_19, %c0_20, %c0_21] : memref<8x1x8x33xf32, #tpu.memory_space<vmem>>, vector<1x1x8x32xf32>
    %34 = vector.shape_cast %33 : vector<1x1x8x32xf32> to vector<8x32xf32>
    %35 = vector.shape_cast %32 : vector<8x32xf32> to vector<1x1x8x32xf32>
    tpu.vector_store %arg6[%c0_18, %c0_19, %c0_20, %c0_21], %35 {strides = array<i32>} : memref<8x1x8x33xf32, #tpu.memory_space<vmem>>, vector<1x1x8x32xf32>,
    %c0_22 = arith.constant 0 : index
    %c0_23 = arith.constant 0 : index
    %c0_24 = arith.constant 0 : index
    %c32 = arith.constant 32 : index
    %36 = vector.load %arg6[%c0_22, %c0_23, %c0_24, %c32] : memref<8x1x8x33xf32, #tpu.memory_space<vmem>>, vector<1x1x8x1xf32>
    %37 = vector.shape_cast %36 : vector<1x1x8x1xf32> to vector<8x1xf32>
    %38 = vector.shape_cast %22 : vector<8x1xf32> to vector<1x1x8x1xf32>
    tpu.vector_store %arg6[%c0_22, %c0_23, %c0_24, %c32], %38 {strides = array<i32>} : memref<8x1x8x33xf32, #tpu.memory_space<vmem>>, vector<1x1x8x1xf32>,
    %cst_25 = arith.constant dense<0.000000e+00> : vector<8x32xf32>
    %39 = tpu.matmul %29, %4, %cst_25 {dimension_numbers = #tpu.dot_dimension_numbers<[1], [0], [0], [1], [0, 0, 1, 1], [], []>} : vector<8x32xf32>, vector<32x32xf32>, vector<8x32xf32> -> vector<8x32xf32>
    %c1 = arith.constant 1 : index
    %c0_26 = arith.constant 0 : index
    %c0_27 = arith.constant 0 : index
    %c0_28 = arith.constant 0 : index
    %40 = vector.load %arg2[%c1, %c0_26, %c0_27, %c0_28] : memref<8x1x8x32xf32, #tpu.memory_space<vmem>>, vector<1x1x8x32xf32>
    %41 = vector.shape_cast %40 : vector<1x1x8x32xf32> to vector<8x32xf32>
    %cst_29 = arith.constant 1.000000e-16 : f32
    %42 = vector.broadcast %cst_29 : f32 to vector<8x32xf32>
    %43 = arith.maximumf %41, %42 : vector<8x32xf32>
    %cst_30 = arith.constant 1.000000e-16 : f32
    %44 = vector.broadcast %cst_30 : f32 to vector<8x32xf32>
    %45 = arith.maximumf %39, %44 : vector<8x32xf32>
    %46 = arith.mulf %43, %45 : vector<8x32xf32>
    %cst_31 = arith.constant dense<0.000000e+00> : vector<8xf32>
    %47 = vector.multi_reduction <add>, %46, %cst_31 [1] : vector<8x32xf32> to vector<8xf32>
    %48 = vector.shape_cast %47 : vector<8xf32> to vector<8x1xf32>
    %49 = math.log %48 : vector<8x1xf32>
    %50 = arith.addf %22, %49 : vector<8x1xf32>
    %51 = tpu.reciprocal %48 {approx = true} : vector<8x1xf32> -> vector<8x1xf32>
    %52 = arith.mulf %48, %51 : vector<8x1xf32>
    %cst_32 = arith.constant 2.000000e+00 : f32
    %53 = vector.broadcast %cst_32 : f32 to vector<8x1xf32>
    %54 = arith.subf %53, %52 : vector<8x1xf32>
    %55 = arith.mulf %51, %54 : vector<8x1xf32>
    %56 = vector.broadcast %55 : vector<8x1xf32> to vector<8x32xf32>
    %57 = arith.mulf %46, %56 : vector<8x32xf32>
    %58 = math.log %46 : vector<8x32xf32>
    %59 = vector.broadcast %49 : vector<8x1xf32> to vector<8x32xf32>
    %60 = arith.subf %58, %59 : vector<8x32xf32>
    %c1_33 = arith.constant 1 : index
    %c0_34 = arith.constant 0 : index
    %c0_35 = arith.constant 0 : index
    %c0_36 = arith.constant 0 : index
    %61 = vector.load %arg6[%c1_33, %c0_34, %c0_35, %c0_36] : memref<8x1x8x33xf32, #tpu.memory_space<vmem>>, vector<1x1x8x32xf32>
    %62 = vector.shape_cast %61 : vector<1x1x8x32xf32> to vector<8x32xf32>
    %63 = vector.shape_cast %60 : vector<8x32xf32> to vector<1x1x8x32xf32>
    tpu.vector_store %arg6[%c1_33, %c0_34, %c0_35, %c0_36], %63 {strides = array<i32>} : memref<8x1x8x33xf32, #tpu.memory_space<vmem>>, vector<1x1x8x32xf32>,
    %c1_37 = arith.constant 1 : index
    %c0_38 = arith.constant 0 : index
    %c0_39 = arith.constant 0 : index
    %c32_40 = arith.constant 32 : index
    %64 = vector.load %arg6[%c1_37, %c0_38, %c0_39, %c32_40] : memref<8x1x8x33xf32, #tpu.memory_space<vmem>>, vector<1x1x8x1xf32>
    %65 = vector.shape_cast %64 : vector<1x1x8x1xf32> to vector<8x1xf32>
    %66 = vector.shape_cast %50 : vector<8x1xf32> to vector<1x1x8x1xf32>
    tpu.vector_store %arg6[%c1_37, %c0_38, %c0_39, %c32_40], %66 {strides = array<i32>} : memref<8x1x8x33xf32, #tpu.memory_space<vmem>>, vector<1x1x8x1xf32>,
    %cst_41 = arith.constant dense<0.000000e+00> : vector<8x32xf32>
    %67 = tpu.matmul %57, %4, %cst_41 {dimension_numbers = #tpu.dot_dimension_numbers<[1], [0], [0], [1], [0, 0, 1, 1], [], []>} : vector<8x32xf32>, vector<32x32xf32>, vector<8x32xf32> -> vector<8x32xf32>
    %c2 = arith.constant 2 : index
    %c0_42 = arith.constant 0 : index
    %c0_43 = arith.constant 0 : index
    %c0_44 = arith.constant 0 : index
    %68 = vector.load %arg2[%c2, %c0_42, %c0_43, %c0_44] : memref<8x1x8x32xf32, #tpu.memory_space<vmem>>, vector<1x1x8x32xf32>
    %69 = vector.shape_cast %68 : vector<1x1x8x32xf32> to vector<8x32xf32>
    %cst_45 = arith.constant 1.000000e-16 : f32
    %70 = vector.broadcast %cst_45 : f32 to vector<8x32xf32>
    %71 = arith.maximumf %69, %70 : vector<8x32xf32>
    %cst_46 = arith.constant 1.000000e-16 : f32
    %72 = vector.broadcast %cst_46 : f32 to vector<8x32xf32>
    %73 = arith.maximumf %67, %72 : vector<8x32xf32>
    %74 = arith.mulf %71, %73 : vector<8x32xf32>
    %cst_47 = arith.constant dense<0.000000e+00> : vector<8xf32>
    %75 = vector.multi_reduction <add>, %74, %cst_47 [1] : vector<8x32xf32> to vector<8xf32>
    %76 = vector.shape_cast %75 : vector<8xf32> to vector<8x1xf32>
    %77 = math.log %76 : vector<8x1xf32>
    %78 = arith.addf %50, %77 : vector<8x1xf32>
    %79 = tpu.reciprocal %76 {approx = true} : vector<8x1xf32> -> vector<8x1xf32>
    %80 = arith.mulf %76, %79 : vector<8x1xf32>
    %cst_48 = arith.constant 2.000000e+00 : f32
    %81 = vector.broadcast %cst_48 : f32 to vector<8x1xf32>
    %82 = arith.subf %81, %80 : vector<8x1xf32>
    %83 = arith.mulf %79, %82 : vector<8x1xf32>
    %84 = vector.broadcast %83 : vector<8x1xf32> to vector<8x32xf32>
    %85 = arith.mulf %74, %84 : vector<8x32xf32>
    %86 = math.log %74 : vector<8x32xf32>
    %87 = vector.broadcast %77 : vector<8x1xf32> to vector<8x32xf32>
    %88 = arith.subf %86, %87 : vector<8x32xf32>
    %c2_49 = arith.constant 2 : index
    %c0_50 = arith.constant 0 : index
    %c0_51 = arith.constant 0 : index
    %c0_52 = arith.constant 0 : index
    %89 = vector.load %arg6[%c2_49, %c0_50, %c0_51, %c0_52] : memref<8x1x8x33xf32, #tpu.memory_space<vmem>>, vector<1x1x8x32xf32>
    %90 = vector.shape_cast %89 : vector<1x1x8x32xf32> to vector<8x32xf32>
    %91 = vector.shape_cast %88 : vector<8x32xf32> to vector<1x1x8x32xf32>
    tpu.vector_store %arg6[%c2_49, %c0_50, %c0_51, %c0_52], %91 {strides = array<i32>} : memref<8x1x8x33xf32, #tpu.memory_space<vmem>>, vector<1x1x8x32xf32>,
    %c2_53 = arith.constant 2 : index
    %c0_54 = arith.constant 0 : index
    %c0_55 = arith.constant 0 : index
    %c32_56 = arith.constant 32 : index
    %92 = vector.load %arg6[%c2_53, %c0_54, %c0_55, %c32_56] : memref<8x1x8x33xf32, #tpu.memory_space<vmem>>, vector<1x1x8x1xf32>
    %93 = vector.shape_cast %92 : vector<1x1x8x1xf32> to vector<8x1xf32>
    %94 = vector.shape_cast %78 : vector<8x1xf32> to vector<1x1x8x1xf32>
    tpu.vector_store %arg6[%c2_53, %c0_54, %c0_55, %c32_56], %94 {strides = array<i32>} : memref<8x1x8x33xf32, #tpu.memory_space<vmem>>, vector<1x1x8x1xf32>,
    %cst_57 = arith.constant dense<0.000000e+00> : vector<8x32xf32>
    %95 = tpu.matmul %85, %4, %cst_57 {dimension_numbers = #tpu.dot_dimension_numbers<[1], [0], [0], [1], [0, 0, 1, 1], [], []>} : vector<8x32xf32>, vector<32x32xf32>, vector<8x32xf32> -> vector<8x32xf32>
    %c3 = arith.constant 3 : index
    %c0_58 = arith.constant 0 : index
    %c0_59 = arith.constant 0 : index
    %c0_60 = arith.constant 0 : index
    %96 = vector.load %arg2[%c3, %c0_58, %c0_59, %c0_60] : memref<8x1x8x32xf32, #tpu.memory_space<vmem>>, vector<1x1x8x32xf32>
    %97 = vector.shape_cast %96 : vector<1x1x8x32xf32> to vector<8x32xf32>
    %cst_61 = arith.constant 1.000000e-16 : f32
    %98 = vector.broadcast %cst_61 : f32 to vector<8x32xf32>
    %99 = arith.maximumf %97, %98 : vector<8x32xf32>
    %cst_62 = arith.constant 1.000000e-16 : f32
    %100 = vector.broadcast %cst_62 : f32 to vector<8x32xf32>
    %101 = arith.maximumf %95, %100 : vector<8x32xf32>
    %102 = arith.mulf %99, %101 : vector<8x32xf32>
    %cst_63 = arith.constant dense<0.000000e+00> : vector<8xf32>
    %103 = vector.multi_reduction <add>, %102, %cst_63 [1] : vector<8x32xf32> to vector<8xf32>
    %104 = vector.shape_cast %103 : vector<8xf32> to vector<8x1xf32>
    %105 = math.log %104 : vector<8x1xf32>
    %106 = arith.addf %78, %105 : vector<8x1xf32>
    %107 = tpu.reciprocal %104 {approx = true} : vector<8x1xf32> -> vector<8x1xf32>
    %108 = arith.mulf %104, %107 : vector<8x1xf32>
    %cst_64 = arith.constant 2.000000e+00 : f32
    %109 = vector.broadcast %cst_64 : f32 to vector<8x1xf32>
    %110 = arith.subf %109, %108 : vector<8x1xf32>
    %111 = arith.mulf %107, %110 : vector<8x1xf32>
    %112 = vector.broadcast %111 : vector<8x1xf32> to vector<8x32xf32>
    %113 = arith.mulf %102, %112 : vector<8x32xf32>
    %114 = math.log %102 : vector<8x32xf32>
    %115 = vector.broadcast %105 : vector<8x1xf32> to vector<8x32xf32>
    %116 = arith.subf %114, %115 : vector<8x32xf32>
    %c3_65 = arith.constant 3 : index
    %c0_66 = arith.constant 0 : index
    %c0_67 = arith.constant 0 : index
    %c0_68 = arith.constant 0 : index
    %117 = vector.load %arg6[%c3_65, %c0_66, %c0_67, %c0_68] : memref<8x1x8x33xf32, #tpu.memory_space<vmem>>, vector<1x1x8x32xf32>
    %118 = vector.shape_cast %117 : vector<1x1x8x32xf32> to vector<8x32xf32>
    %119 = vector.shape_cast %116 : vector<8x32xf32> to vector<1x1x8x32xf32>
    tpu.vector_store %arg6[%c3_65, %c0_66, %c0_67, %c0_68], %119 {strides = array<i32>} : memref<8x1x8x33xf32, #tpu.memory_space<vmem>>, vector<1x1x8x32xf32>,
    %c3_69 = arith.constant 3 : index
    %c0_70 = arith.constant 0 : index
    %c0_71 = arith.constant 0 : index
    %c32_72 = arith.constant 32 : index
    %120 = vector.load %arg6[%c3_69, %c0_70, %c0_71, %c32_72] : memref<8x1x8x33xf32, #tpu.memory_space<vmem>>, vector<1x1x8x1xf32>
    %121 = vector.shape_cast %120 : vector<1x1x8x1xf32> to vector<8x1xf32>
    %122 = vector.shape_cast %106 : vector<8x1xf32> to vector<1x1x8x1xf32>
    tpu.vector_store %arg6[%c3_69, %c0_70, %c0_71, %c32_72], %122 {strides = array<i32>} : memref<8x1x8x33xf32, #tpu.memory_space<vmem>>, vector<1x1x8x1xf32>,
    %cst_73 = arith.constant dense<0.000000e+00> : vector<8x32xf32>
    %123 = tpu.matmul %113, %4, %cst_73 {dimension_numbers = #tpu.dot_dimension_numbers<[1], [0], [0], [1], [0, 0, 1, 1], [], []>} : vector<8x32xf32>, vector<32x32xf32>, vector<8x32xf32> -> vector<8x32xf32>
    %c4 = arith.constant 4 : index
    %c0_74 = arith.constant 0 : index
    %c0_75 = arith.constant 0 : index
    %c0_76 = arith.constant 0 : index
    %124 = vector.load %arg2[%c4, %c0_74, %c0_75, %c0_76] : memref<8x1x8x32xf32, #tpu.memory_space<vmem>>, vector<1x1x8x32xf32>
    %125 = vector.shape_cast %124 : vector<1x1x8x32xf32> to vector<8x32xf32>
    %cst_77 = arith.constant 1.000000e-16 : f32
    %126 = vector.broadcast %cst_77 : f32 to vector<8x32xf32>
    %127 = arith.maximumf %125, %126 : vector<8x32xf32>
    %cst_78 = arith.constant 1.000000e-16 : f32
    %128 = vector.broadcast %cst_78 : f32 to vector<8x32xf32>
    %129 = arith.maximumf %123, %128 : vector<8x32xf32>
    %130 = arith.mulf %127, %129 : vector<8x32xf32>
    %cst_79 = arith.constant dense<0.000000e+00> : vector<8xf32>
    %131 = vector.multi_reduction <add>, %130, %cst_79 [1] : vector<8x32xf32> to vector<8xf32>
    %132 = vector.shape_cast %131 : vector<8xf32> to vector<8x1xf32>
    %133 = math.log %132 : vector<8x1xf32>
    %134 = arith.addf %106, %133 : vector<8x1xf32>
    %135 = tpu.reciprocal %132 {approx = true} : vector<8x1xf32> -> vector<8x1xf32>
    %136 = arith.mulf %132, %135 : vector<8x1xf32>
    %cst_80 = arith.constant 2.000000e+00 : f32
    %137 = vector.broadcast %cst_80 : f32 to vector<8x1xf32>
    %138 = arith.subf %137, %136 : vector<8x1xf32>
    %139 = arith.mulf %135, %138 : vector<8x1xf32>
    %140 = vector.broadcast %139 : vector<8x1xf32> to vector<8x32xf32>
    %141 = arith.mulf %130, %140 : vector<8x32xf32>
    %142 = math.log %130 : vector<8x32xf32>
    %143 = vector.broadcast %133 : vector<8x1xf32> to vector<8x32xf32>
    %144 = arith.subf %142, %143 : vector<8x32xf32>
    %c4_81 = arith.constant 4 : index
    %c0_82 = arith.constant 0 : index
    %c0_83 = arith.constant 0 : index
    %c0_84 = arith.constant 0 : index
    %145 = vector.load %arg6[%c4_81, %c0_82, %c0_83, %c0_84] : memref<8x1x8x33xf32, #tpu.memory_space<vmem>>, vector<1x1x8x32xf32>
    %146 = vector.shape_cast %145 : vector<1x1x8x32xf32> to vector<8x32xf32>
    %147 = vector.shape_cast %144 : vector<8x32xf32> to vector<1x1x8x32xf32>
    tpu.vector_store %arg6[%c4_81, %c0_82, %c0_83, %c0_84], %147 {strides = array<i32>} : memref<8x1x8x33xf32, #tpu.memory_space<vmem>>, vector<1x1x8x32xf32>,
    %c4_85 = arith.constant 4 : index
    %c0_86 = arith.constant 0 : index
    %c0_87 = arith.constant 0 : index
    %c32_88 = arith.constant 32 : index
    %148 = vector.load %arg6[%c4_85, %c0_86, %c0_87, %c32_88] : memref<8x1x8x33xf32, #tpu.memory_space<vmem>>, vector<1x1x8x1xf32>
    %149 = vector.shape_cast %148 : vector<1x1x8x1xf32> to vector<8x1xf32>
    %150 = vector.shape_cast %134 : vector<8x1xf32> to vector<1x1x8x1xf32>
    tpu.vector_store %arg6[%c4_85, %c0_86, %c0_87, %c32_88], %150 {strides = array<i32>} : memref<8x1x8x33xf32, #tpu.memory_space<vmem>>, vector<1x1x8x1xf32>,
    %cst_89 = arith.constant dense<0.000000e+00> : vector<8x32xf32>
    %151 = tpu.matmul %141, %4, %cst_89 {dimension_numbers = #tpu.dot_dimension_numbers<[1], [0], [0], [1], [0, 0, 1, 1], [], []>} : vector<8x32xf32>, vector<32x32xf32>, vector<8x32xf32> -> vector<8x32xf32>
    %c5 = arith.constant 5 : index
    %c0_90 = arith.constant 0 : index
    %c0_91 = arith.constant 0 : index
    %c0_92 = arith.constant 0 : index
    %152 = vector.load %arg2[%c5, %c0_90, %c0_91, %c0_92] : memref<8x1x8x32xf32, #tpu.memory_space<vmem>>, vector<1x1x8x32xf32>
    %153 = vector.shape_cast %152 : vector<1x1x8x32xf32> to vector<8x32xf32>
    %cst_93 = arith.constant 1.000000e-16 : f32
    %154 = vector.broadcast %cst_93 : f32 to vector<8x32xf32>
    %155 = arith.maximumf %153, %154 : vector<8x32xf32>
    %cst_94 = arith.constant 1.000000e-16 : f32
    %156 = vector.broadcast %cst_94 : f32 to vector<8x32xf32>
    %157 = arith.maximumf %151, %156 : vector<8x32xf32>
    %158 = arith.mulf %155, %157 : vector<8x32xf32>
    %cst_95 = arith.constant dense<0.000000e+00> : vector<8xf32>
    %159 = vector.multi_reduction <add>, %158, %cst_95 [1] : vector<8x32xf32> to vector<8xf32>
    %160 = vector.shape_cast %159 : vector<8xf32> to vector<8x1xf32>
    %161 = math.log %160 : vector<8x1xf32>
    %162 = arith.addf %134, %161 : vector<8x1xf32>
    %163 = tpu.reciprocal %160 {approx = true} : vector<8x1xf32> -> vector<8x1xf32>
    %164 = arith.mulf %160, %163 : vector<8x1xf32>
    %cst_96 = arith.constant 2.000000e+00 : f32
    %165 = vector.broadcast %cst_96 : f32 to vector<8x1xf32>
    %166 = arith.subf %165, %164 : vector<8x1xf32>
    %167 = arith.mulf %163, %166 : vector<8x1xf32>
    %168 = vector.broadcast %167 : vector<8x1xf32> to vector<8x32xf32>
    %169 = arith.mulf %158, %168 : vector<8x32xf32>
    %170 = math.log %158 : vector<8x32xf32>
    %171 = vector.broadcast %161 : vector<8x1xf32> to vector<8x32xf32>
    %172 = arith.subf %170, %171 : vector<8x32xf32>
    %c5_97 = arith.constant 5 : index
    %c0_98 = arith.constant 0 : index
    %c0_99 = arith.constant 0 : index
    %c0_100 = arith.constant 0 : index
    %173 = vector.load %arg6[%c5_97, %c0_98, %c0_99, %c0_100] : memref<8x1x8x33xf32, #tpu.memory_space<vmem>>, vector<1x1x8x32xf32>
    %174 = vector.shape_cast %173 : vector<1x1x8x32xf32> to vector<8x32xf32>
    %175 = vector.shape_cast %172 : vector<8x32xf32> to vector<1x1x8x32xf32>
    tpu.vector_store %arg6[%c5_97, %c0_98, %c0_99, %c0_100], %175 {strides = array<i32>} : memref<8x1x8x33xf32, #tpu.memory_space<vmem>>, vector<1x1x8x32xf32>,
    %c5_101 = arith.constant 5 : index
    %c0_102 = arith.constant 0 : index
    %c0_103 = arith.constant 0 : index
    %c32_104 = arith.constant 32 : index
    %176 = vector.load %arg6[%c5_101, %c0_102, %c0_103, %c32_104] : memref<8x1x8x33xf32, #tpu.memory_space<vmem>>, vector<1x1x8x1xf32>
    %177 = vector.shape_cast %176 : vector<1x1x8x1xf32> to vector<8x1xf32>
    %178 = vector.shape_cast %162 : vector<8x1xf32> to vector<1x1x8x1xf32>
    tpu.vector_store %arg6[%c5_101, %c0_102, %c0_103, %c32_104], %178 {strides = array<i32>} : memref<8x1x8x33xf32, #tpu.memory_space<vmem>>, vector<1x1x8x1xf32>,
    %cst_105 = arith.constant dense<0.000000e+00> : vector<8x32xf32>
    %179 = tpu.matmul %169, %4, %cst_105 {dimension_numbers = #tpu.dot_dimension_numbers<[1], [0], [0], [1], [0, 0, 1, 1], [], []>} : vector<8x32xf32>, vector<32x32xf32>, vector<8x32xf32> -> vector<8x32xf32>
    %c6 = arith.constant 6 : index
    %c0_106 = arith.constant 0 : index
    %c0_107 = arith.constant 0 : index
    %c0_108 = arith.constant 0 : index
    %180 = vector.load %arg2[%c6, %c0_106, %c0_107, %c0_108] : memref<8x1x8x32xf32, #tpu.memory_space<vmem>>, vector<1x1x8x32xf32>
    %181 = vector.shape_cast %180 : vector<1x1x8x32xf32> to vector<8x32xf32>
    %cst_109 = arith.constant 1.000000e-16 : f32
    %182 = vector.broadcast %cst_109 : f32 to vector<8x32xf32>
    %183 = arith.maximumf %181, %182 : vector<8x32xf32>
    %cst_110 = arith.constant 1.000000e-16 : f32
    %184 = vector.broadcast %cst_110 : f32 to vector<8x32xf32>
    %185 = arith.maximumf %179, %184 : vector<8x32xf32>
    %186 = arith.mulf %183, %185 : vector<8x32xf32>
    %cst_111 = arith.constant dense<0.000000e+00> : vector<8xf32>
    %187 = vector.multi_reduction <add>, %186, %cst_111 [1] : vector<8x32xf32> to vector<8xf32>
    %188 = vector.shape_cast %187 : vector<8xf32> to vector<8x1xf32>
    %189 = math.log %188 : vector<8x1xf32>
    %190 = arith.addf %162, %189 : vector<8x1xf32>
    %191 = tpu.reciprocal %188 {approx = true} : vector<8x1xf32> -> vector<8x1xf32>
    %192 = arith.mulf %188, %191 : vector<8x1xf32>
    %cst_112 = arith.constant 2.000000e+00 : f32
    %193 = vector.broadcast %cst_112 : f32 to vector<8x1xf32>
    %194 = arith.subf %193, %192 : vector<8x1xf32>
    %195 = arith.mulf %191, %194 : vector<8x1xf32>
    %196 = vector.broadcast %195 : vector<8x1xf32> to vector<8x32xf32>
    %197 = arith.mulf %186, %196 : vector<8x32xf32>
    %198 = math.log %186 : vector<8x32xf32>
    %199 = vector.broadcast %189 : vector<8x1xf32> to vector<8x32xf32>
    %200 = arith.subf %198, %199 : vector<8x32xf32>
    %c6_113 = arith.constant 6 : index
    %c0_114 = arith.constant 0 : index
    %c0_115 = arith.constant 0 : index
    %c0_116 = arith.constant 0 : index
    %201 = vector.load %arg6[%c6_113, %c0_114, %c0_115, %c0_116] : memref<8x1x8x33xf32, #tpu.memory_space<vmem>>, vector<1x1x8x32xf32>
    %202 = vector.shape_cast %201 : vector<1x1x8x32xf32> to vector<8x32xf32>
    %203 = vector.shape_cast %200 : vector<8x32xf32> to vector<1x1x8x32xf32>
    tpu.vector_store %arg6[%c6_113, %c0_114, %c0_115, %c0_116], %203 {strides = array<i32>} : memref<8x1x8x33xf32, #tpu.memory_space<vmem>>, vector<1x1x8x32xf32>,
    %c6_117 = arith.constant 6 : index
    %c0_118 = arith.constant 0 : index
    %c0_119 = arith.constant 0 : index
    %c32_120 = arith.constant 32 : index
    %204 = vector.load %arg6[%c6_117, %c0_118, %c0_119, %c32_120] : memref<8x1x8x33xf32, #tpu.memory_space<vmem>>, vector<1x1x8x1xf32>
    %205 = vector.shape_cast %204 : vector<1x1x8x1xf32> to vector<8x1xf32>
    %206 = vector.shape_cast %190 : vector<8x1xf32> to vector<1x1x8x1xf32>
    tpu.vector_store %arg6[%c6_117, %c0_118, %c0_119, %c32_120], %206 {strides = array<i32>} : memref<8x1x8x33xf32, #tpu.memory_space<vmem>>, vector<1x1x8x1xf32>,
    %cst_121 = arith.constant dense<0.000000e+00> : vector<8x32xf32>
    %207 = tpu.matmul %197, %4, %cst_121 {dimension_numbers = #tpu.dot_dimension_numbers<[1], [0], [0], [1], [0, 0, 1, 1], [], []>} : vector<8x32xf32>, vector<32x32xf32>, vector<8x32xf32> -> vector<8x32xf32>
    %c7 = arith.constant 7 : index
    %c0_122 = arith.constant 0 : index
    %c0_123 = arith.constant 0 : index
    %c0_124 = arith.constant 0 : index
    %208 = vector.load %arg2[%c7, %c0_122, %c0_123, %c0_124] : memref<8x1x8x32xf32, #tpu.memory_space<vmem>>, vector<1x1x8x32xf32>
    %209 = vector.shape_cast %208 : vector<1x1x8x32xf32> to vector<8x32xf32>
    %cst_125 = arith.constant 1.000000e-16 : f32
    %210 = vector.broadcast %cst_125 : f32 to vector<8x32xf32>
    %211 = arith.maximumf %209, %210 : vector<8x32xf32>
    %cst_126 = arith.constant 1.000000e-16 : f32
    %212 = vector.broadcast %cst_126 : f32 to vector<8x32xf32>
    %213 = arith.maximumf %207, %212 : vector<8x32xf32>
    %214 = arith.mulf %211, %213 : vector<8x32xf32>
    %cst_127 = arith.constant dense<0.000000e+00> : vector<8xf32>
    %215 = vector.multi_reduction <add>, %214, %cst_127 [1] : vector<8x32xf32> to vector<8xf32>
    %216 = vector.shape_cast %215 : vector<8xf32> to vector<8x1xf32>
    %217 = math.log %216 : vector<8x1xf32>
    %218 = arith.addf %190, %217 : vector<8x1xf32>
    %219 = tpu.reciprocal %216 {approx = true} : vector<8x1xf32> -> vector<8x1xf32>
    %220 = arith.mulf %216, %219 : vector<8x1xf32>
    %cst_128 = arith.constant 2.000000e+00 : f32
    %221 = vector.broadcast %cst_128 : f32 to vector<8x1xf32>
    %222 = arith.subf %221, %220 : vector<8x1xf32>
    %223 = arith.mulf %219, %222 : vector<8x1xf32>
    %224 = vector.broadcast %223 : vector<8x1xf32> to vector<8x32xf32>
    %225 = arith.mulf %214, %224 : vector<8x32xf32>
    %226 = math.log %214 : vector<8x32xf32>
    %227 = vector.broadcast %217 : vector<8x1xf32> to vector<8x32xf32>
    %228 = arith.subf %226, %227 : vector<8x32xf32>
    %c7_129 = arith.constant 7 : index
    %c0_130 = arith.constant 0 : index
    %c0_131 = arith.constant 0 : index
    %c0_132 = arith.constant 0 : index
    %229 = vector.load %arg6[%c7_129, %c0_130, %c0_131, %c0_132] : memref<8x1x8x33xf32, #tpu.memory_space<vmem>>, vector<1x1x8x32xf32>
    %230 = vector.shape_cast %229 : vector<1x1x8x32xf32> to vector<8x32xf32>
    %231 = vector.shape_cast %228 : vector<8x32xf32> to vector<1x1x8x32xf32>
    tpu.vector_store %arg6[%c7_129, %c0_130, %c0_131, %c0_132], %231 {strides = array<i32>} : memref<8x1x8x33xf32, #tpu.memory_space<vmem>>, vector<1x1x8x32xf32>,
    %c7_133 = arith.constant 7 : index
    %c0_134 = arith.constant 0 : index
    %c0_135 = arith.constant 0 : index
    %c32_136 = arith.constant 32 : index
    %232 = vector.load %arg6[%c7_133, %c0_134, %c0_135, %c32_136] : memref<8x1x8x33xf32, #tpu.memory_space<vmem>>, vector<1x1x8x1xf32>
    %233 = vector.shape_cast %232 : vector<1x1x8x1xf32> to vector<8x1xf32>
    %234 = vector.shape_cast %218 : vector<8x1xf32> to vector<1x1x8x1xf32>
    tpu.vector_store %arg6[%c7_133, %c0_134, %c0_135, %c32_136], %234 {strides = array<i32>} : memref<8x1x8x33xf32, #tpu.memory_space<vmem>>, vector<1x1x8x1xf32>,
    %c0_137 = arith.constant 0 : index
    %c0_138 = arith.constant 0 : index
    %c0_139 = arith.constant 0 : index
    %235 = vector.load %arg7[%c0_137, %c0_138, %c0_139] : memref<1x8x32xf32, #tpu.memory_space<vmem>>, vector<1x8x32xf32>
    %236 = vector.shape_cast %235 : vector<1x8x32xf32> to vector<8x32xf32>
    %237 = vector.shape_cast %225 : vector<8x32xf32> to vector<1x8x32xf32>
    tpu.vector_store %arg7[%c0_137, %c0_138, %c0_139], %237 {strides = array<i32>} : memref<1x8x32xf32, #tpu.memory_space<vmem>>, vector<1x8x32xf32>,
    %c0_140 = arith.constant 0 : index
    %c0_141 = arith.constant 0 : index
    %c0_142 = arith.constant 0 : index
    %238 = vector.load %arg8[%c0_140, %c0_141, %c0_142] : memref<1x8x1xf32, #tpu.memory_space<vmem>>, vector<1x8x1xf32>
    %239 = vector.shape_cast %238 : vector<1x8x1xf32> to vector<8x1xf32>
    %240 = vector.shape_cast %218 : vector<8x1xf32> to vector<1x8x1xf32>
    tpu.vector_store %arg8[%c0_140, %c0_141, %c0_142], %240 {strides = array<i32>} : memref<1x8x1xf32, #tpu.memory_space<vmem>>, vector<1x8x1xf32>,
    return
  }
  func.func @transform_0(%arg0: i32, %arg1: i32) -> (i32, i32, i32, i32) {
    %c0_i32 = arith.constant 0 : i32
    %c0_i32_0 = arith.constant 0 : i32
    %c0_i32_1 = arith.constant 0 : i32
    return %arg1, %arg0, %c0_i32, %c0_i32_0 : i32, i32, i32, i32
  }
  func.func @transform_1(%arg0: i32, %arg1: i32) -> (i32, i32, i32) {
    %c0_i32 = arith.constant 0 : i32
    %c0_i32_0 = arith.constant 0 : i32
    %c0_i32_1 = arith.constant 0 : i32
    return %arg0, %c0_i32, %c0_i32_0 : i32, i32, i32
  }
  func.func @transform_2(%arg0: i32, %arg1: i32) -> (i32, i32, i32) {
    %c0_i32 = arith.constant 0 : i32
    %c0_i32_0 = arith.constant 0 : i32
    %c0_i32_1 = arith.constant 0 : i32
    return %arg0, %c0_i32, %c0_i32_0 : i32, i32, i32
  }
  func.func @transform_3(%arg0: i32, %arg1: i32) -> (i32, i32, i32) {
    %c0_i32 = arith.constant 0 : i32
    %c0_i32_0 = arith.constant 0 : i32
    %c0_i32_1 = arith.constant 0 : i32
    return %arg0, %c0_i32, %c0_i32_0 : i32, i32, i32
  }
  func.func @transform_4(%arg0: i32, %arg1: i32) -> (i32, i32, i32, i32) {
    %c0_i32 = arith.constant 0 : i32
    %c0_i32_0 = arith.constant 0 : i32
    %c0_i32_1 = arith.constant 0 : i32
    return %arg1, %arg0, %c0_i32, %c0_i32_0 : i32, i32, i32, i32
  }
  func.func @transform_5(%arg0: i32, %arg1: i32) -> (i32, i32, i32) {
    %c0_i32 = arith.constant 0 : i32
    %c0_i32_0 = arith.constant 0 : i32
    %c0_i32_1 = arith.constant 0 : i32
    return %arg0, %c0_i32, %c0_i32_0 : i32, i32, i32
  }
  func.func @transform_6(%arg0: i32, %arg1: i32) -> (i32, i32, i32) {
    %c0_i32 = arith.constant 0 : i32
    %c0_i32_0 = arith.constant 0 : i32
    %c0_i32_1 = arith.constant 0 : i32
    return %arg0, %c0_i32, %c0_i32_0 : i32, i32, i32
  }
}

</mosaic_0001>

<llo_original>
// kernel: tpu_custom_call.1
$region0: #{tpu_custom_call.1}
  #allocation0 [shape = 'u32[]', space=smem, size = 0x4, offset = 0x4, fixed_abs, tag = 'smem constant byte address 0x4 - core index']
  #allocation1 [shape = 'u32[144,128]{1,0:T(1,128)}', space=vmem, size = 0x12000, scoped, tag = 'internal scratch']
  %s0 = inlined_call_operand.hbm [shape: f32[8,2,8,32], index: 0, kind: input, shape index: {}]
  %s1 = inlined_call_operand.vmem [shape: f32[2,8,32], index: 1, kind: input, shape index: {}]
  %s2 = inlined_call_operand.vmem [shape: f32[2,8,1], index: 2, kind: input, shape index: {}]
  %s3 = inlined_call_operand.hbm [shape: f32[2,32,32], index: 3, kind: input, shape index: {}]
  %s4 = inlined_call_operand.hbm [shape: f32[8,2,8,33], index: 4, kind: output, shape index: {0}]
  %s5 = inlined_call_operand.hbm [shape: f32[2,8,32], index: 5, kind: output, shape index: {1}]
  %s6 = inlined_call_operand.vmem [shape: f32[2,8,1], index: 6, kind: output, shape index: {2}]
  %7 = xla_tuple %s4, %s5, %s6
  %s8 = sld [smem:[#allocation0]]
  $region77: #{tpu_custom_call.1} parent=0
    _
  %s10 = ssub.s32 1, %s8
  %s11 = scalar_select 0, %s10, %s8
  $region1: #{tpu_custom_call.1} parent=0
    #allocation2 [shape = 'u8[65536]{0}', space=vmem, size = 0x10000, scoped, tag = 'input window, operand 0']
    #allocation3 [shape = 's32[2]{0}', space=sflag, size = 0x8, scoped, tag = 'scoped memory for tpu_custom_call.1']
    #allocation4 [shape = 's32[2]{0}', space=sflag, size = 0x8, scoped, tag = 'scoped memory for tpu_custom_call.1']
    #allocation5 [shape = 'u8[32768]{0}', space=vmem, size = 0x8000, scoped, tag = 'input window, operand 3']
    #allocation6 [shape = 's32[2]{0}', space=sflag, size = 0x8, scoped, tag = 'scoped memory for tpu_custom_call.1']
    #allocation7 [shape = 'u8[65536]{0}', space=vmem, size = 0x10000, scoped, tag = 'output window, operand 0']
    #allocation8 [shape = 'u8[8192]{0}', space=vmem, size = 0x2000, scoped, tag = 'output window, operand 1']
    #allocation9 [shape = 's32[2]{0}', space=sflag, size = 0x8, scoped, tag = 'scoped memory for tpu_custom_call.1']
    %12 = vsyncpa [#allocation3], 0
    %s13 = scalar_lea.sflag [#allocation3], 1
    %14 = vsyncpa %s13, 0
    %15 = vsyncpa [#allocation6], 0
    %s16 = scalar_lea.sflag [#allocation6], 1
    %17 = vsyncpa %s16, 0
    %18 = vsyncpa [#allocation4], 0
    %s19 = scalar_lea.sflag [#allocation4], 1
    %20 = vsyncpa %s19, 0
    %21 = vsyncpa [#allocation9], 0
    %s22 = scalar_lea.sflag [#allocation9], 1
    %23 = vsyncpa %s22, 0
    loop: start=0, step=1, limit=4
    $region2: #{tpu_custom_call.1} parent=1 // loop_pre_header
      _
    $region3: #{tpu_custom_call.1} parent=1 // loop_header
      %s25 = sphi 0, %s29
      %p26 = scmp.ge.s32.totalorder %s25, 4
      %s32 = sphi 0, %s44
      %s33 = sphi 0, %s40
      %s34 = sphi 0, %s32
      %s35 = sphi 0, %s33
      %s36 = sphi 0, %s34
      %s37 = sphi 0, %s35
      %s49 = sphi 0, %s51
      %s52 = sphi 0, %s49
      %s53 = sphi 0, %s52
      %s69 = sphi 0, %s53
      %s75 = sphi 0, %s77
      %s78 = sphi 0, %s75
      %s79 = sphi 0, %s78
      %s95 = sphi 0, %s79
      %s101 = sphi 0, %s103
      %s104 = sphi 0, %s101
      %s105 = sphi 0, %s104
      %s121 = sphi 0, %s105
      %s127 = sphi 0, %s129
      %s130 = sphi 0, %s127
      %s131 = sphi 0, %s130
      %s147 = sphi 0, %s131
      %s155 = sphi 0, %s157
      %s158 = sphi 0, %s155
      %s159 = sphi 0, %s158
      %s175 = sphi 0, %s159
      %s181 = sphi 0, %s183
      %s184 = sphi 0, %s181
      %s185 = sphi 0, %s184
      %s201 = sphi 0, %s185
      %s207 = sphi 0, %s209
      %s210 = sphi 0, %s207
      %s211 = sphi 0, %s210
      %s227 = sphi 0, %s211
    $region4: #{tpu_custom_call.1} parent=1 // loop_header_branch
      %28 = sbr.rel (%p26) target = $region8
    $region5: #{tpu_custom_call.1} parent=1 // loop_body
      %s30 = ssub.s32 %s25, 1
      %s31 = ssub.s32 %s25, 2
      %s38 = sadd.s32 1, %s33
      %p39 = scmp.ge.s32.totalorder %s38, 1
      %s40 = scalar_select %p39, 0, %s38
      %s41 = sadd.s32 1, %s32
      %s42 = scalar_select %p39, %s41, %s32
      %p43 = scmp.ge.s32.totalorder %s42, 2
      %s44 = scalar_select %p43, 0, %s42
      %s45 = ssub.s32 %s33, %s40
      %s46 = ssub.s32 %s32, %s44
      %s47 = sor.u32 %s45, %s46
      %p48 = scmp.eq.s32.totalorder %s47, 0
      %s50 = sadd.s32 %s49, 1
      %s51 = scalar_select %p48, %s49, %s50
      %p54 = pneg %p48
      %p55 = scmp.eq.s32.totalorder %s25, 1
      %p56 = por %p54, %p55
      %p57 = scmp.ne.s32.totalorder %s49, %s52
      %p58 = scmp.eq.s32.totalorder %s25, 0
      %p59 = por %p57, %p58
      %p60 = scmp.ne.s32.totalorder %s49, %s52
      %p61 = scmp.eq.s32.totalorder %s30, 1
      %p62 = por %p60, %p61
      %p63 = scmp.ne.s32.totalorder %s52, %s53
      %p64 = scmp.eq.s32.totalorder %s30, 0
      %p65 = por %p63, %p64
      %p66 = scmp.ne.s32.totalorder %s52, %s53
      %p67 = scmp.eq.s32.totalorder %s31, 1
      %p68 = por %p66, %p67
      %p70 = scmp.ne.s32.totalorder %s53, %s69
      %p71 = scmp.eq.s32.totalorder %s31, 0
      %p72 = por %p70, %p71
      %s73 = ssub.s32 %s32, %s44
      %p74 = scmp.eq.s32.totalorder %s73, 0
      %s76 = sadd.s32 %s75, 1
      %s77 = scalar_select %p74, %s75, %s76
      %p80 = pneg %p74
      %p81 = scmp.eq.s32.totalorder %s25, 1
      %p82 = por %p80, %p81
      %p83 = scmp.ne.s32.totalorder %s75, %s78
      %p84 = scmp.eq.s32.totalorder %s25, 0
      %p85 = por %p83, %p84
      %p86 = scmp.ne.s32.totalorder %s75, %s78
      %p87 = scmp.eq.s32.totalorder %s30, 1
      %p88 = por %p86, %p87
      %p89 = scmp.ne.s32.totalorder %s78, %s79
      %p90 = scmp.eq.s32.totalorder %s30, 0
      %p91 = por %p89, %p90
      %p92 = scmp.ne.s32.totalorder %s78, %s79
      %p93 = scmp.eq.s32.totalorder %s31, 1
      %p94 = por %p92, %p93
      %p96 = scmp.ne.s32.totalorder %s79, %s95
      %p97 = scmp.eq.s32.totalorder %s31, 0
      %p98 = por %p96, %p97
      %s99 = ssub.s32 %s32, %s44
      %p100 = scmp.eq.s32.totalorder %s99, 0
      %s102 = sadd.s32 %s101, 1
      %s103 = scalar_select %p100, %s101, %s102
      %p106 = pneg %p100
      %p107 = scmp.eq.s32.totalorder %s25, 1
      %p108 = por %p106, %p107
      %p109 = scmp.ne.s32.totalorder %s101, %s104
      %p110 = scmp.eq.s32.totalorder %s25, 0
      %p111 = por %p109, %p110
      %p112 = scmp.ne.s32.totalorder %s101, %s104
      %p113 = scmp.eq.s32.totalorder %s30, 1
      %p114 = por %p112, %p113
      %p115 = scmp.ne.s32.totalorder %s104, %s105
      %p116 = scmp.eq.s32.totalorder %s30, 0
      %p117 = por %p115, %p116
      %p118 = scmp.ne.s32.totalorder %s104, %s105
      %p119 = scmp.eq.s32.totalorder %s31, 1
      %p120 = por %p118, %p119
      %p122 = scmp.ne.s32.totalorder %s105, %s121
      %p123 = scmp.eq.s32.totalorder %s31, 0
      %p124 = por %p122, %p123
      %s125 = ssub.s32 %s32, %s44
      %p126 = scmp.eq.s32.totalorder %s125, 0
      %s128 = sadd.s32 %s127, 1
      %s129 = scalar_select %p126, %s127, %s128
      %p132 = pneg %p126
      %p133 = scmp.eq.s32.totalorder %s25, 1
      %p134 = por %p132, %p133
      %p135 = scmp.ne.s32.totalorder %s127, %s130
      %p136 = scmp.eq.s32.totalorder %s25, 0
      %p137 = por %p135, %p136
      %p138 = scmp.ne.s32.totalorder %s127, %s130
      %p139 = scmp.eq.s32.totalorder %s30, 1
      %p140 = por %p138, %p139
      %p141 = scmp.ne.s32.totalorder %s130, %s131
      %p142 = scmp.eq.s32.totalorder %s30, 0
      %p143 = por %p141, %p142
      %p144 = scmp.ne.s32.totalorder %s130, %s131
      %p145 = scmp.eq.s32.totalorder %s31, 1
      %p146 = por %p144, %p145
      %p148 = scmp.ne.s32.totalorder %s131, %s147
      %p149 = scmp.eq.s32.totalorder %s31, 0
      %p150 = por %p148, %p149
      %s151 = ssub.s32 %s33, %s40
      %s152 = ssub.s32 %s32, %s44
      %s153 = sor.u32 %s151, %s152
      %p154 = scmp.eq.s32.totalorder %s153, 0
      %s156 = sadd.s32 %s155, 1
      %s157 = scalar_select %p154, %s155, %s156
      %p160 = pneg %p154
      %p161 = scmp.eq.s32.totalorder %s25, 1
      %p162 = por %p160, %p161
      %p163 = scmp.ne.s32.totalorder %s155, %s158
      %p164 = scmp.eq.s32.totalorder %s25, 0
      %p165 = por %p163, %p164
      %p166 = scmp.ne.s32.totalorder %s155, %s158
      %p167 = scmp.eq.s32.totalorder %s30, 1
      %p168 = por %p166, %p167
      %p169 = scmp.ne.s32.totalorder %s158, %s159
      %p170 = scmp.eq.s32.totalorder %s30, 0
      %p171 = por %p169, %p170
      %p172 = scmp.ne.s32.totalorder %s158, %s159
      %p173 = scmp.eq.s32.totalorder %s31, 1
      %p174 = por %p172, %p173
      %p176 = scmp.ne.s32.totalorder %s159, %s175
      %p177 = scmp.eq.s32.totalorder %s31, 0
      %p178 = por %p176, %p177
      %s179 = ssub.s32 %s32, %s44
      %p180 = scmp.eq.s32.totalorder %s179, 0
      %s182 = sadd.s32 %s181, 1
      %s183 = scalar_select %p180, %s181, %s182
      %p186 = pneg %p180
      %p187 = scmp.eq.s32.totalorder %s25, 1
      %p188 = por %p186, %p187
      %p189 = scmp.ne.s32.totalorder %s181, %s184
      %p190 = scmp.eq.s32.totalorder %s25, 0
      %p191 = por %p189, %p190
      %p192 = scmp.ne.s32.totalorder %s181, %s184
      %p193 = scmp.eq.s32.totalorder %s30, 1
      %p194 = por %p192, %p193
      %p195 = scmp.ne.s32.totalorder %s184, %s185
      %p196 = scmp.eq.s32.totalorder %s30, 0
      %p197 = por %p195, %p196
      %p198 = scmp.ne.s32.totalorder %s184, %s185
      %p199 = scmp.eq.s32.totalorder %s31, 1
      %p200 = por %p198, %p199
      %p202 = scmp.ne.s32.totalorder %s185, %s201
      %p203 = scmp.eq.s32.totalorder %s31, 0
      %p204 = por %p202, %p203
      %s205 = ssub.s32 %s32, %s44
      %p206 = scmp.eq.s32.totalorder %s205, 0
      %s208 = sadd.s32 %s207, 1
      %s209 = scalar_select %p206, %s207, %s208
      %p212 = pneg %p206
      %p213 = scmp.eq.s32.totalorder %s25, 1
      %p214 = por %p212, %p213
      %p215 = scmp.ne.s32.totalorder %s207, %s210
      %p216 = scmp.eq.s32.totalorder %s25, 0
      %p217 = por %p215, %p216
      %p218 = scmp.ne.s32.totalorder %s207, %s210
      %p219 = scmp.eq.s32.totalorder %s30, 1
      %p220 = por %p218, %p219
      %p221 = scmp.ne.s32.totalorder %s210, %s211
      %p222 = scmp.eq.s32.totalorder %s30, 0
      %p223 = por %p221, %p222
      %p224 = scmp.ne.s32.totalorder %s210, %s211
      %p225 = scmp.eq.s32.totalorder %s31, 1
      %p226 = por %p224, %p225
      %p228 = scmp.ne.s32.totalorder %s211, %s227
      %p229 = scmp.eq.s32.totalorder %s31, 0
      %p230 = por %p228, %p229
      %p231 = scmp.le.s32.totalorder 1, %s25
      %p232 = scmp.lt.s32.totalorder %s25, 3
      %p233 = pnand %p231, %p232
      %p234 = pneg %p233
      // Predicated region
      $region9: #{tpu_custom_call.1} parent=5 // pred_check
        _
      $region10: #{tpu_custom_call.1} parent=5 // pred_check_branch
        %236 = sbr.rel (%p233) target = $region12
      $region11: #{tpu_custom_call.1} parent=5 // pred_region
        %s237 = ssub.s32 %s25, 1
      $region12: #{tpu_custom_call.1} parent=5 // pred_fallthru
        _
      %p238 = scmp.lt.s32.totalorder %s25, 2
      // Predicated region
      $region13: #{tpu_custom_call.1} parent=5 // pred_check
        %p239 = pneg %p238
      $region14: #{tpu_custom_call.1} parent=5 // pred_check_branch
        %241 = sbr.rel (%p239) target = $region16
      $region15: #{tpu_custom_call.1} parent=5 // pred_region
        // Predicated region
        $region17: #{tpu_custom_call.1} parent=15 // pred_check
          %p242 = pneg %p59
        $region18: #{tpu_custom_call.1} parent=15 // pred_check_branch
          %244 = sbr.rel (%p242) target = $region20
        $region19: #{tpu_custom_call.1} parent=15 // pred_region
          %s245 = sand.u32 %s49, 1
          %s246 = scalar_lea.sflag [#allocation3], %s245
          %s247 = sand.u32 %s49, 1
          %s248 = smul.addr %s247, 64
          %s249 = scalar_lea.vmem [#allocation2], %s248
          %s250 = smul.u32 8, %s33
          %s252 = ssub.s32 1024, 1024
          %253 = vsyncadd %s246, %s252
          %s254 = smul.addr %s250, 2
          %s255 = sadd.s32 %s32, %s254
          %s256 = smul.addr %s255, 128
          %s257 = scalar_lea.hbm %s0, %s256
          %s258 = sshll.u32 %s249, 4
          %s259 = int_to_ptr.vmem [resolvable:$true] %s258
          %264 = dma.hbm_to_vmem [thread:$0]  %s257, 1024, %s259, %s246, 256, 128, 8
        $region20: #{tpu_custom_call.1} parent=15 // pred_fallthru
          _
        // Predicated region
        $region21: #{tpu_custom_call.1} parent=15 // pred_check
          %p265 = pneg %p85
        $region22: #{tpu_custom_call.1} parent=15 // pred_check_branch
          %267 = sbr.rel (%p265) target = $region24
        $region23: #{tpu_custom_call.1} parent=15 // pred_region
          %p268 = scmp.lt.s32.totalorder %s32, 1
          %s269 = scalar_select %p268, %s32, 1
          %s270 = smul.addr %s269, 8
          %s271 = scalar_lea.vmem %s1, %s270
        $region24: #{tpu_custom_call.1} parent=15 // pred_fallthru
          _
        // Predicated region
        $region25: #{tpu_custom_call.1} parent=15 // pred_check
          %p272 = pneg %p111
        $region26: #{tpu_custom_call.1} parent=15 // pred_check_branch
          %274 = sbr.rel (%p272) target = $region28
        $region27: #{tpu_custom_call.1} parent=15 // pred_region
          %p275 = scmp.lt.s32.totalorder %s32, 1
          %s276 = scalar_select %p275, %s32, 1
          %s277 = smul.addr %s276, 8
          %s278 = scalar_lea.vmem %s2, %s277
        $region28: #{tpu_custom_call.1} parent=15 // pred_fallthru
          _
        // Predicated region
        $region29: #{tpu_custom_call.1} parent=15 // pred_check
          %p279 = pneg %p137
        $region30: #{tpu_custom_call.1} parent=15 // pred_check_branch
          %281 = sbr.rel (%p279) target = $region32
        $region31: #{tpu_custom_call.1} parent=15 // pred_region
          %s282 = sand.u32 %s127, 1
          %s283 = scalar_lea.sflag [#allocation6], %s282
          %s284 = sand.u32 %s127, 1
          %s285 = smul.addr %s284, 32
          %s286 = scalar_lea.vmem [#allocation5], %s285
          %s288 = ssub.s32 512, 512
          %289 = vsyncadd %s283, %s288
          %s290 = smul.addr %s32, 4
          %s291 = smul.addr %s290, 128
          %s292 = scalar_lea.hbm %s3, %s291
          %s293 = sshll.u32 %s286, 4
          %s294 = int_to_ptr.vmem [resolvable:$true] %s293
          %299 = dma.hbm_to_vmem [thread:$0]  %s292, 512, %s294, %s283, 128, 128, 8
        $region32: #{tpu_custom_call.1} parent=15 // pred_fallthru
          _
      $region16: #{tpu_custom_call.1} parent=5 // pred_fallthru
        _
      %p300 = scmp.le.s32.totalorder 1, %s25
      %p301 = scmp.lt.s32.totalorder %s25, 3
      %p302 = pnand %p300, %p301
      %p303 = pneg %p302
      // Predicated region
      $region33: #{tpu_custom_call.1} parent=5 // pred_check
        _
      $region34: #{tpu_custom_call.1} parent=5 // pred_check_branch
        %305 = sbr.rel (%p302) target = $region36
      $region35: #{tpu_custom_call.1} parent=5 // pred_region
        %s306 = ssub.s32 %s25, 1
        %s307 = sand.u32 %s52, 1
        %s308 = scalar_lea.sflag [#allocation3], %s307
        %s309 = sand.u32 %s52, 1
        %s310 = smul.addr %s309, 64
        %s311 = scalar_lea.vmem [#allocation2], %s310
        // Predicated region
        $region37: #{tpu_custom_call.1} parent=35 // pred_check
          %p312 = pneg %p65
        $region38: #{tpu_custom_call.1} parent=35 // pred_check_branch
          %314 = sbr.rel (%p312) target = $region40
        $region39: #{tpu_custom_call.1} parent=35 // pred_region
          %315 = dma.done %s308, 1024
        $region40: #{tpu_custom_call.1} parent=35 // pred_fallthru
          _
        %s316 = sand.u32 %s130, 1
        %s317 = scalar_lea.sflag [#allocation6], %s316
        %s318 = sand.u32 %s130, 1
        %s319 = smul.addr %s318, 32
        %s320 = scalar_lea.vmem [#allocation5], %s319
        // Predicated region
        $region41: #{tpu_custom_call.1} parent=35 // pred_check
          %p321 = pneg %p143
        $region42: #{tpu_custom_call.1} parent=35 // pred_check_branch
          %323 = sbr.rel (%p321) target = $region44
        $region43: #{tpu_custom_call.1} parent=35 // pred_region
          %324 = dma.done %s317, 512
        $region44: #{tpu_custom_call.1} parent=35 // pred_fallthru
          _
        %s325 = sand.u32 %s52, 1
        %s326 = scalar_lea.sflag [#allocation3], %s325
        %s327 = sand.u32 %s52, 1
        %s328 = smul.addr %s327, 64
        %s329 = scalar_lea.vmem [#allocation2], %s328
        %p330 = pneg %p65
        %p331 = pneg %p62
        %p332 = scmp.lt.s32.totalorder %s34, 1
        %s333 = scalar_select %p332, %s34, 1
        %s334 = smul.addr %s333, 8
        %s335 = scalar_lea.vmem %s1, %s334
        %p336 = pneg %p91
        %p337 = pneg %p88
        %p338 = scmp.lt.s32.totalorder %s34, 1
        %s339 = scalar_select %p338, %s34, 1
        %s340 = smul.addr %s339, 8
        %s341 = scalar_lea.vmem %s2, %s340
        %p342 = pneg %p117
        %p343 = pneg %p114
        %s344 = sand.u32 %s130, 1
        %s345 = scalar_lea.sflag [#allocation6], %s344
        %s346 = sand.u32 %s130, 1
        %s347 = smul.addr %s346, 32
        %s348 = scalar_lea.vmem [#allocation5], %s347
        %p349 = pneg %p143
        %p350 = pneg %p140
        %p351 = pneg %p171
        %p352 = pneg %p168
        %s353 = sand.u32 %s158, 1
        %s354 = scalar_lea.sflag [#allocation4], %s353
        %s355 = sand.u32 %s158, 1
        %s356 = smul.addr %s355, 64
        %s357 = scalar_lea.vmem [#allocation7], %s356
        %p358 = pneg %p197
        %p359 = pneg %p194
        %s360 = sand.u32 %s184, 1
        %s361 = scalar_lea.sflag [#allocation9], %s360
        %s362 = sand.u32 %s184, 1
        %s363 = smul.addr %s362, 8
        %s364 = scalar_lea.vmem [#allocation8], %s363
        %p365 = pneg %p223
        %p366 = pneg %p220
        %p367 = scmp.lt.s32.totalorder %s34, 1
        %s368 = scalar_select %p367, %s34, 1
        %s369 = smul.addr %s368, 8
        %s370 = scalar_lea.vmem %s6, %s369
        %s371 = smul.u32 8, %s35
        %p372 = scmp.lt.s32.totalorder %s34, 1
        %s373 = scalar_select %p372, %s34, 1
        %s374 = smul.addr %s373, 8
        %s375 = scalar_lea.vmem %s1, %s374
        %p376 = scmp.lt.s32.totalorder %s34, 1
        %s377 = scalar_select %p376, %s34, 1
        %s378 = smul.addr %s377, 8
        %s379 = scalar_lea.vmem %s2, %s378
        %s380 = smul.u32 8, %s35
        %p381 = scmp.lt.s32.totalorder %s34, 1
        %s382 = scalar_select %p381, %s34, 1
        %s383 = smul.addr %s382, 8
        %s384 = scalar_lea.vmem %s6, %s383
        %p385 = scmp.eq.s32.totalorder %s35, 0
        // Predicated region
        $region45: #{tpu_custom_call.1} parent=35 // pred_check
          %p386 = pneg %p385
        $region46: #{tpu_custom_call.1} parent=35 // pred_check_branch
          %388 = sbr.rel (%p386) target = $region48
        $region47: #{tpu_custom_call.1} parent=35 // pred_region
          %v389 = vld [vmem:[%s375] sm:$0xff]
          %vm390 = vcmask 261120
          %391 = vst.msk [vmem:[%s364] sm:$0xff] %vm390, %v389
          %v392 = vld [vmem:[%s379] sm:$0xff]
          %vm393 = vcmask 7168
          %394 = vst.msk [vmem:[%s384] sm:$0xff] %vm393, %v392
        $region48: #{tpu_custom_call.1} parent=35 // pred_fallthru
          _
        %v395 = vld [vmem:[%s320] sm:$0xff]
        %v396 = vld [vmem:[%s320 + $0x8] sm:$0xff]
        %v397 = vld [vmem:[%s320 + $0x10] sm:$0xff]
        %v398 = vld [vmem:[%s320 + $0x18] sm:$0xff]
        %v399 = vld [vmem:[%s364] sm:$0xff]
        %v400 = vld [vmem:[%s384] sm:$0xff]
        %vm401 = vcmask 261120
        %v403 = vsel %vm401, %v399, 0
        %405 = vmatprep.subr.mxu0 0.0
        %406 = vmatpush1.msra.mxu0 %v395
        %407 = vmatprep.subr.mxu0 0.0
        %408 = vmatpush1.msra.mxu0 %v396
        %409 = vmatprep.subr.mxu0 0.0
        %410 = vmatpush1.msra.mxu0 %v397
        %411 = vmatprep.subr.mxu0 0.0
        %412 = vmatpush1.msra.mxu0 %v398
        %413 = vmatprep.subr.mxu0 0.0
        %414 = vmatpush1.msra.mxu0 0.0
        %415 = vmatprep.subr.mxu0 0.0
        %416 = vmatpush1.msra.mxu0 0.0
        %417 = vmatprep.subr.mxu0 0.0
        %418 = vmatpush1.msra.mxu0 0.0
        %419 = vmatprep.subr.mxu0 0.0
        %420 = vmatpush1.msra.mxu0 0.0
        %421 = vmatprep.subr.mxu0 0.0
        %422 = vmatpush1.msra.mxu0 0.0
        %423 = vmatprep.subr.mxu0 0.0
        %424 = vmatpush1.msra.mxu0 0.0
        %425 = vmatprep.subr.mxu0 0.0
        %426 = vmatpush1.msra.mxu0 0.0
        %427 = vmatprep.subr.mxu0 0.0
        %428 = vmatpush1.msra.mxu0 0.0
        %429 = vmatprep.subr.mxu0 0.0
        %430 = vmatpush1.msra.mxu0 0.0
        %431 = vmatprep.subr.mxu0 0.0
        %432 = vmatpush1.msra.mxu0 0.0
        %433 = vmatprep.subr.mxu0 0.0
        %434 = vmatpush1.msra.mxu0 0.0
        %435 = vmatprep.subr.mxu0 0.0
        %436 = vmatpush1.msra.mxu0 0.0
        %437 = vmatprep.subr.mxu0 0.0
        %438 = vmatpush1.msra.mxu0 0.0
        %439 = vmatprep.subr.mxu0 0.0
        %440 = vmatpush1.msra.mxu0 0.0
        %441 = vmatprep.subr.mxu0 0.0
        %442 = vmatpush1.msra.mxu0 0.0
        %443 = vmatprep.subr.mxu0 0.0
        %444 = vmatpush1.msra.mxu0 0.0
        %445 = vmatprep.subr.mxu0 0.0
        %446 = vmatpush1.msra.mxu0 0.0
        %447 = vmatprep.subr.mxu0 0.0
        %448 = vmatpush1.msra.mxu0 0.0
        %449 = vmatprep.subr.mxu0 0.0
        %450 = vmatpush1.msra.mxu0 0.0
        %451 = vmatprep.subr.mxu0 0.0
        %452 = vmatpush1.msra.mxu0 0.0
        %453 = vmatprep.subr.mxu0 0.0
        %454 = vmatpush1.msra.mxu0 0.0
        %455 = vmatprep.subr.mxu0 0.0
        %456 = vmatpush1.msra.mxu0 0.0
        %457 = vmatprep.subr.mxu0 0.0
        %458 = vmatpush1.msra.mxu0 0.0
        %459 = vmatprep.subr.mxu0 0.0
        %460 = vmatpush1.msra.mxu0 0.0
        %461 = vmatprep.subr.mxu0 0.0
        %462 = vmatpush1.msra.mxu0 0.0
        %463 = vmatprep.subr.mxu0 0.0
        %464 = vmatpush1.msra.mxu0 0.0
        %465 = vmatprep.subr.mxu0 0.0
        %466 = vmatpush1.msra.mxu0 0.0
        %467 = vmatprep.subr.mxu0 0.0
        %468 = vmatpush1.msra.mxu0 0.0
        %469 = vmatprep.mubr.f32.mxu0 0.0
        %470 = vmatmul.mubr.f32.gmra.mrb[0].mxu0 %v403
        %v471 = vpop.f32.mrb[0].mxu0
        %v472 = vadd.f32 0.0, %v471
        %v473 = vpop.f32.mrb[0].mxu0
        %474 = vdwg.mxu0
        %s475 = scalar_select %p385, 1, 0
        %v476 = vstv %s475
        %vm477 = vcmp.eq.s32.totalorder %v476, 1
        %v478 = vsel %vm477, %v399, %v472
        %v479 = vld [vmem:[%s311] sm:$0xff]
        %v480 = vmax.f32 %v479, 1e-16
        %v481 = vmax.f32 %v478, 1e-16
        %v482 = vmul.f32 %v480, %v481
        %v483 = vsel %vm401, %v482, 0.0
        %484 = vadd.xlane.f32.xlu0 %v483
        %v485 = vpop.xlane.xlu0 %484
        %v486 = vlog2.pop %v485
        %v487 = vmul.f32 %v486, 0.6931472
        %v488 = vadd.f32 %v400, %v487
        %v489 = vrcp.pop %v485
        %v490 = vmul.f32 %v485, %v489
        %v491 = vsub.f32 2.0, %v490
        %v492 = vmul.f32 %v489, %v491
        %v493 = vmul.f32 %v482, %v492
        %v494 = vlog2.pop %v482
        %v495 = vmul.f32 %v494, 0.6931472
        %v496 = vsub.f32 %v495, %v487
        %497 = vst.msk [vmem:[%s357] sm:$0xff] %vm401, %v496
        %499 = vrot.lane.b32.xlu0 %v488, 32
        %v500 = vpop.permute.xlu0 %499
        %vm502 = vcmask 269568
        %503 = vst.msk [vmem:[%s357] sm:$0xff] %vm502, %v500
        %v505 = vsel %vm401, %v493, 0
        %507 = vmatprep.subr.mxu0 0.0
        %508 = vmatpush1.msra.mxu0 %v395
        %509 = vmatprep.subr.mxu0 0.0
        %510 = vmatpush1.msra.mxu0 %v396
        %511 = vmatprep.subr.mxu0 0.0
        %512 = vmatpush1.msra.mxu0 %v397
        %513 = vmatprep.subr.mxu0 0.0
        %514 = vmatpush1.msra.mxu0 %v398
        %515 = vmatprep.subr.mxu0 0.0
        %516 = vmatpush1.msra.mxu0 0.0
        %517 = vmatprep.subr.mxu0 0.0
        %518 = vmatpush1.msra.mxu0 0.0
        %519 = vmatprep.subr.mxu0 0.0
        %520 = vmatpush1.msra.mxu0 0.0
        %521 = vmatprep.subr.mxu0 0.0
        %522 = vmatpush1.msra.mxu0 0.0
        %523 = vmatprep.subr.mxu0 0.0
        %524 = vmatpush1.msra.mxu0 0.0
        %525 = vmatprep.subr.mxu0 0.0
        %526 = vmatpush1.msra.mxu0 0.0
        %527 = vmatprep.subr.mxu0 0.0
        %528 = vmatpush1.msra.mxu0 0.0
        %529 = vmatprep.subr.mxu0 0.0
        %530 = vmatpush1.msra.mxu0 0.0
        %531 = vmatprep.subr.mxu0 0.0
        %532 = vmatpush1.msra.mxu0 0.0
        %533 = vmatprep.subr.mxu0 0.0
        %534 = vmatpush1.msra.mxu0 0.0
        %535 = vmatprep.subr.mxu0 0.0
        %536 = vmatpush1.msra.mxu0 0.0
        %537 = vmatprep.subr.mxu0 0.0
        %538 = vmatpush1.msra.mxu0 0.0
        %539 = vmatprep.subr.mxu0 0.0
        %540 = vmatpush1.msra.mxu0 0.0
        %541 = vmatprep.subr.mxu0 0.0
        %542 = vmatpush1.msra.mxu0 0.0
        %543 = vmatprep.subr.mxu0 0.0
        %544 = vmatpush1.msra.mxu0 0.0
        %545 = vmatprep.subr.mxu0 0.0
        %546 = vmatpush1.msra.mxu0 0.0
        %547 = vmatprep.subr.mxu0 0.0
        %548 = vmatpush1.msra.mxu0 0.0
        %549 = vmatprep.subr.mxu0 0.0
        %550 = vmatpush1.msra.mxu0 0.0
        %551 = vmatprep.subr.mxu0 0.0
        %552 = vmatpush1.msra.mxu0 0.0
        %553 = vmatprep.subr.mxu0 0.0
        %554 = vmatpush1.msra.mxu0 0.0
        %555 = vmatprep.subr.mxu0 0.0
        %556 = vmatpush1.msra.mxu0 0.0
        %557 = vmatprep.subr.mxu0 0.0
        %558 = vmatpush1.msra.mxu0 0.0
        %559 = vmatprep.subr.mxu0 0.0
        %560 = vmatpush1.msra.mxu0 0.0
        %561 = vmatprep.subr.mxu0 0.0
        %562 = vmatpush1.msra.mxu0 0.0
        %563 = vmatprep.subr.mxu0 0.0
        %564 = vmatpush1.msra.mxu0 0.0
        %565 = vmatprep.subr.mxu0 0.0
        %566 = vmatpush1.msra.mxu0 0.0
        %567 = vmatprep.subr.mxu0 0.0
        %568 = vmatpush1.msra.mxu0 0.0
        %569 = vmatprep.subr.mxu0 0.0
        %570 = vmatpush1.msra.mxu0 0.0
        %571 = vmatprep.mubr.f32.mxu0 0.0
        %572 = vmatmul.mubr.f32.gmra.mrb[0].mxu0 %v505
        %v573 = vpop.f32.mrb[0].mxu0
        %v574 = vadd.f32 0.0, %v573
        %v575 = vpop.f32.mrb[0].mxu0
        %576 = vdwg.mxu0
        %s577 = scalar_lea.vmem %s311, 8 [#allocation2]
        %v578 = vld [vmem:[%s577] sm:$0xff]
        %v579 = vmax.f32 %v578, 1e-16
        %v580 = vmax.f32 %v574, 1e-16
        %v581 = vmul.f32 %v579, %v580
        %v582 = vsel %vm401, %v581, 0.0
        %583 = vadd.xlane.f32.xlu0 %v582
        %v584 = vpop.xlane.xlu0 %583
        %v585 = vlog2.pop %v584
        %v586 = vmul.f32 %v585, 0.6931472
        %v587 = vadd.f32 %v488, %v586
        %v588 = vrcp.pop %v584
        %v589 = vmul.f32 %v584, %v588
        %v590 = vsub.f32 2.0, %v589
        %v591 = vmul.f32 %v588, %v590
        %v592 = vmul.f32 %v581, %v591
        %v593 = vlog2.pop %v581
        %v594 = vmul.f32 %v593, 0.6931472
        %v595 = vsub.f32 %v594, %v586
        %s596 = scalar_lea.vmem %s357, 8 [#allocation7]
        %597 = vst.msk [vmem:[%s596] sm:$0xff] %vm401, %v595
        %599 = vrot.lane.b32.xlu0 %v587, 32
        %v600 = vpop.permute.xlu0 %599
        %602 = vst.msk [vmem:[%s596] sm:$0xff] %vm502, %v600
        %v604 = vsel %vm401, %v592, 0
        %606 = vmatprep.subr.mxu0 0.0
        %607 = vmatpush1.msra.mxu0 %v395
        %608 = vmatprep.subr.mxu0 0.0
        %609 = vmatpush1.msra.mxu0 %v396
        %610 = vmatprep.subr.mxu0 0.0
        %611 = vmatpush1.msra.mxu0 %v397
        %612 = vmatprep.subr.mxu0 0.0
        %613 = vmatpush1.msra.mxu0 %v398
        %614 = vmatprep.subr.mxu0 0.0
        %615 = vmatpush1.msra.mxu0 0.0
        %616 = vmatprep.subr.mxu0 0.0
        %617 = vmatpush1.msra.mxu0 0.0
        %618 = vmatprep.subr.mxu0 0.0
        %619 = vmatpush1.msra.mxu0 0.0
        %620 = vmatprep.subr.mxu0 0.0
        %621 = vmatpush1.msra.mxu0 0.0
        %622 = vmatprep.subr.mxu0 0.0
        %623 = vmatpush1.msra.mxu0 0.0
        %624 = vmatprep.subr.mxu0 0.0
        %625 = vmatpush1.msra.mxu0 0.0
        %626 = vmatprep.subr.mxu0 0.0
        %627 = vmatpush1.msra.mxu0 0.0
        %628 = vmatprep.subr.mxu0 0.0
        %629 = vmatpush1.msra.mxu0 0.0
        %630 = vmatprep.subr.mxu0 0.0
        %631 = vmatpush1.msra.mxu0 0.0
        %632 = vmatprep.subr.mxu0 0.0
        %633 = vmatpush1.msra.mxu0 0.0
        %634 = vmatprep.subr.mxu0 0.0
        %635 = vmatpush1.msra.mxu0 0.0
        %636 = vmatprep.subr.mxu0 0.0
        %637 = vmatpush1.msra.mxu0 0.0
        %638 = vmatprep.subr.mxu0 0.0
        %639 = vmatpush1.msra.mxu0 0.0
        %640 = vmatprep.subr.mxu0 0.0
        %641 = vmatpush1.msra.mxu0 0.0
        %642 = vmatprep.subr.mxu0 0.0
        %643 = vmatpush1.msra.mxu0 0.0
        %644 = vmatprep.subr.mxu0 0.0
        %645 = vmatpush1.msra.mxu0 0.0
        %646 = vmatprep.subr.mxu0 0.0
        %647 = vmatpush1.msra.mxu0 0.0
        %648 = vmatprep.subr.mxu0 0.0
        %649 = vmatpush1.msra.mxu0 0.0
        %650 = vmatprep.subr.mxu0 0.0
        %651 = vmatpush1.msra.mxu0 0.0
        %652 = vmatprep.subr.mxu0 0.0
        %653 = vmatpush1.msra.mxu0 0.0
        %654 = vmatprep.subr.mxu0 0.0
        %655 = vmatpush1.msra.mxu0 0.0
        %656 = vmatprep.subr.mxu0 0.0
        %657 = vmatpush1.msra.mxu0 0.0
        %658 = vmatprep.subr.mxu0 0.0
        %659 = vmatpush1.msra.mxu0 0.0
        %660 = vmatprep.subr.mxu0 0.0
        %661 = vmatpush1.msra.mxu0 0.0
        %662 = vmatprep.subr.mxu0 0.0
        %663 = vmatpush1.msra.mxu0 0.0
        %664 = vmatprep.subr.mxu0 0.0
        %665 = vmatpush1.msra.mxu0 0.0
        %666 = vmatprep.subr.mxu0 0.0
        %667 = vmatpush1.msra.mxu0 0.0
        %668 = vmatprep.subr.mxu0 0.0
        %669 = vmatpush1.msra.mxu0 0.0
        %670 = vmatprep.mubr.f32.mxu0 0.0
        %671 = vmatmul.mubr.f32.gmra.mrb[0].mxu0 %v604
        %v672 = vpop.f32.mrb[0].mxu0
        %v673 = vadd.f32 0.0, %v672
        %v674 = vpop.f32.mrb[0].mxu0
        %675 = vdwg.mxu0
        %s676 = scalar_lea.vmem %s311, 16 [#allocation2]
        %v677 = vld [vmem:[%s676] sm:$0xff]
        %v678 = vmax.f32 %v677, 1e-16
        %v679 = vmax.f32 %v673, 1e-16
        %v680 = vmul.f32 %v678, %v679
        %v681 = vsel %vm401, %v680, 0.0
        %682 = vadd.xlane.f32.xlu0 %v681
        %v683 = vpop.xlane.xlu0 %682
        %v684 = vlog2.pop %v683
        %v685 = vmul.f32 %v684, 0.6931472
        %v686 = vadd.f32 %v587, %v685
        %v687 = vrcp.pop %v683
        %v688 = vmul.f32 %v683, %v687
        %v689 = vsub.f32 2.0, %v688
        %v690 = vmul.f32 %v687, %v689
        %v691 = vmul.f32 %v680, %v690
        %v692 = vlog2.pop %v680
        %v693 = vmul.f32 %v692, 0.6931472
        %v694 = vsub.f32 %v693, %v685
        %s695 = scalar_lea.vmem %s357, 16 [#allocation7]
        %696 = vst.msk [vmem:[%s695] sm:$0xff] %vm401, %v694
        %698 = vrot.lane.b32.xlu0 %v686, 32
        %v699 = vpop.permute.xlu0 %698
        %701 = vst.msk [vmem:[%s695] sm:$0xff] %vm502, %v699
        %v703 = vsel %vm401, %v691, 0
        %705 = vmatprep.subr.mxu0 0.0
        %706 = vmatpush1.msra.mxu0 %v395
        %707 = vmatprep.subr.mxu0 0.0
        %708 = vmatpush1.msra.mxu0 %v396
        %709 = vmatprep.subr.mxu0 0.0
        %710 = vmatpush1.msra.mxu0 %v397
        %711 = vmatprep.subr.mxu0 0.0
        %712 = vmatpush1.msra.mxu0 %v398
        %713 = vmatprep.subr.mxu0 0.0
        %714 = vmatpush1.msra.mxu0 0.0
        %715 = vmatprep.subr.mxu0 0.0
        %716 = vmatpush1.msra.mxu0 0.0
        %717 = vmatprep.subr.mxu0 0.0
        %718 = vmatpush1.msra.mxu0 0.0
        %719 = vmatprep.subr.mxu0 0.0
        %720 = vmatpush1.msra.mxu0 0.0
        %721 = vmatprep.subr.mxu0 0.0
        %722 = vmatpush1.msra.mxu0 0.0
        %723 = vmatprep.subr.mxu0 0.0
        %724 = vmatpush1.msra.mxu0 0.0
        %725 = vmatprep.subr.mxu0 0.0
        %726 = vmatpush1.msra.mxu0 0.0
        %727 = vmatprep.subr.mxu0 0.0
        %728 = vmatpush1.msra.mxu0 0.0
        %729 = vmatprep.subr.mxu0 0.0
        %730 = vmatpush1.msra.mxu0 0.0
        %731 = vmatprep.subr.mxu0 0.0
        %732 = vmatpush1.msra.mxu0 0.0
        %733 = vmatprep.subr.mxu0 0.0
        %734 = vmatpush1.msra.mxu0 0.0
        %735 = vmatprep.subr.mxu0 0.0
        %736 = vmatpush1.msra.mxu0 0.0
        %737 = vmatprep.subr.mxu0 0.0
        %738 = vmatpush1.msra.mxu0 0.0
        %739 = vmatprep.subr.mxu0 0.0
        %740 = vmatpush1.msra.mxu0 0.0
        %741 = vmatprep.subr.mxu0 0.0
        %742 = vmatpush1.msra.mxu0 0.0
        %743 = vmatprep.subr.mxu0 0.0
        %744 = vmatpush1.msra.mxu0 0.0
        %745 = vmatprep.subr.mxu0 0.0
        %746 = vmatpush1.msra.mxu0 0.0
        %747 = vmatprep.subr.mxu0 0.0
        %748 = vmatpush1.msra.mxu0 0.0
        %749 = vmatprep.subr.mxu0 0.0
        %750 = vmatpush1.msra.mxu0 0.0
        %751 = vmatprep.subr.mxu0 0.0
        %752 = vmatpush1.msra.mxu0 0.0
        %753 = vmatprep.subr.mxu0 0.0
        %754 = vmatpush1.msra.mxu0 0.0
        %755 = vmatprep.subr.mxu0 0.0
        %756 = vmatpush1.msra.mxu0 0.0
        %757 = vmatprep.subr.mxu0 0.0
        %758 = vmatpush1.msra.mxu0 0.0
        %759 = vmatprep.subr.mxu0 0.0
        %760 = vmatpush1.msra.mxu0 0.0
        %761 = vmatprep.subr.mxu0 0.0
        %762 = vmatpush1.msra.mxu0 0.0
        %763 = vmatprep.subr.mxu0 0.0
        %764 = vmatpush1.msra.mxu0 0.0
        %765 = vmatprep.subr.mxu0 0.0
        %766 = vmatpush1.msra.mxu0 0.0
        %767 = vmatprep.subr.mxu0 0.0
        %768 = vmatpush1.msra.mxu0 0.0
        %769 = vmatprep.mubr.f32.mxu0 0.0
        %770 = vmatmul.mubr.f32.gmra.mrb[0].mxu0 %v703
        %v771 = vpop.f32.mrb[0].mxu0
        %v772 = vadd.f32 0.0, %v771
        %v773 = vpop.f32.mrb[0].mxu0
        %774 = vdwg.mxu0
        %s775 = scalar_lea.vmem %s311, 24 [#allocation2]
        %v776 = vld [vmem:[%s775] sm:$0xff]
        %v777 = vmax.f32 %v776, 1e-16
        %v778 = vmax.f32 %v772, 1e-16
        %v779 = vmul.f32 %v777, %v778
        %v780 = vsel %vm401, %v779, 0.0
        %781 = vadd.xlane.f32.xlu0 %v780
        %v782 = vpop.xlane.xlu0 %781
        %v783 = vlog2.pop %v782
        %v784 = vmul.f32 %v783, 0.6931472
        %v785 = vadd.f32 %v686, %v784
        %v786 = vrcp.pop %v782
        %v787 = vmul.f32 %v782, %v786
        %v788 = vsub.f32 2.0, %v787
        %v789 = vmul.f32 %v786, %v788
        %v790 = vmul.f32 %v779, %v789
        %v791 = vlog2.pop %v779
        %v792 = vmul.f32 %v791, 0.6931472
        %v793 = vsub.f32 %v792, %v784
        %s794 = scalar_lea.vmem %s357, 24 [#allocation7]
        %795 = vst.msk [vmem:[%s794] sm:$0xff] %vm401, %v793
        %797 = vrot.lane.b32.xlu0 %v785, 32
        %v798 = vpop.permute.xlu0 %797
        %800 = vst.msk [vmem:[%s794] sm:$0xff] %vm502, %v798
        %v802 = vsel %vm401, %v790, 0
        %804 = vmatprep.subr.mxu0 0.0
        %805 = vmatpush1.msra.mxu0 %v395
        %806 = vmatprep.subr.mxu0 0.0
        %807 = vmatpush1.msra.mxu0 %v396
        %808 = vmatprep.subr.mxu0 0.0
        %809 = vmatpush1.msra.mxu0 %v397
        %810 = vmatprep.subr.mxu0 0.0
        %811 = vmatpush1.msra.mxu0 %v398
        %812 = vmatprep.subr.mxu0 0.0
        %813 = vmatpush1.msra.mxu0 0.0
        %814 = vmatprep.subr.mxu0 0.0
        %815 = vmatpush1.msra.mxu0 0.0
        %816 = vmatprep.subr.mxu0 0.0
        %817 = vmatpush1.msra.mxu0 0.0
        %818 = vmatprep.subr.mxu0 0.0
        %819 = vmatpush1.msra.mxu0 0.0
        %820 = vmatprep.subr.mxu0 0.0
        %821 = vmatpush1.msra.mxu0 0.0
        %822 = vmatprep.subr.mxu0 0.0
        %823 = vmatpush1.msra.mxu0 0.0
        %824 = vmatprep.subr.mxu0 0.0
        %825 = vmatpush1.msra.mxu0 0.0
        %826 = vmatprep.subr.mxu0 0.0
        %827 = vmatpush1.msra.mxu0 0.0
        %828 = vmatprep.subr.mxu0 0.0
        %829 = vmatpush1.msra.mxu0 0.0
        %830 = vmatprep.subr.mxu0 0.0
        %831 = vmatpush1.msra.mxu0 0.0
        %832 = vmatprep.subr.mxu0 0.0
        %833 = vmatpush1.msra.mxu0 0.0
        %834 = vmatprep.subr.mxu0 0.0
        %835 = vmatpush1.msra.mxu0 0.0
        %836 = vmatprep.subr.mxu0 0.0
        %837 = vmatpush1.msra.mxu0 0.0
        %838 = vmatprep.subr.mxu0 0.0
        %839 = vmatpush1.msra.mxu0 0.0
        %840 = vmatprep.subr.mxu0 0.0
        %841 = vmatpush1.msra.mxu0 0.0
        %842 = vmatprep.subr.mxu0 0.0
        %843 = vmatpush1.msra.mxu0 0.0
        %844 = vmatprep.subr.mxu0 0.0
        %845 = vmatpush1.msra.mxu0 0.0
        %846 = vmatprep.subr.mxu0 0.0
        %847 = vmatpush1.msra.mxu0 0.0
        %848 = vmatprep.subr.mxu0 0.0
        %849 = vmatpush1.msra.mxu0 0.0
        %850 = vmatprep.subr.mxu0 0.0
        %851 = vmatpush1.msra.mxu0 0.0
        %852 = vmatprep.subr.mxu0 0.0
        %853 = vmatpush1.msra.mxu0 0.0
        %854 = vmatprep.subr.mxu0 0.0
        %855 = vmatpush1.msra.mxu0 0.0
        %856 = vmatprep.subr.mxu0 0.0
        %857 = vmatpush1.msra.mxu0 0.0
        %858 = vmatprep.subr.mxu0 0.0
        %859 = vmatpush1.msra.mxu0 0.0
        %860 = vmatprep.subr.mxu0 0.0
        %861 = vmatpush1.msra.mxu0 0.0
        %862 = vmatprep.subr.mxu0 0.0
        %863 = vmatpush1.msra.mxu0 0.0
        %864 = vmatprep.subr.mxu0 0.0
        %865 = vmatpush1.msra.mxu0 0.0
        %866 = vmatprep.subr.mxu0 0.0
        %867 = vmatpush1.msra.mxu0 0.0
        %868 = vmatprep.mubr.f32.mxu0 0.0
        %869 = vmatmul.mubr.f32.gmra.mrb[0].mxu0 %v802
        %v870 = vpop.f32.mrb[0].mxu0
        %v871 = vadd.f32 0.0, %v870
        %v872 = vpop.f32.mrb[0].mxu0
        %873 = vdwg.mxu0
        %s874 = scalar_lea.vmem %s311, 32 [#allocation2]
        %v875 = vld [vmem:[%s874] sm:$0xff]
        %v876 = vmax.f32 %v875, 1e-16
        %v877 = vmax.f32 %v871, 1e-16
        %v878 = vmul.f32 %v876, %v877
        %v879 = vsel %vm401, %v878, 0.0
        %880 = vadd.xlane.f32.xlu0 %v879
        %v881 = vpop.xlane.xlu0 %880
        %v882 = vlog2.pop %v881
        %v883 = vmul.f32 %v882, 0.6931472
        %v884 = vadd.f32 %v785, %v883
        %v885 = vrcp.pop %v881
        %v886 = vmul.f32 %v881, %v885
        %v887 = vsub.f32 2.0, %v886
        %v888 = vmul.f32 %v885, %v887
        %v889 = vmul.f32 %v878, %v888
        %v890 = vlog2.pop %v878
        %v891 = vmul.f32 %v890, 0.6931472
        %v892 = vsub.f32 %v891, %v883
        %s893 = scalar_lea.vmem %s357, 32 [#allocation7]
        %894 = vst.msk [vmem:[%s893] sm:$0xff] %vm401, %v892
        %896 = vrot.lane.b32.xlu0 %v884, 32
        %v897 = vpop.permute.xlu0 %896
        %899 = vst.msk [vmem:[%s893] sm:$0xff] %vm502, %v897
        %v901 = vsel %vm401, %v889, 0
        %903 = vmatprep.subr.mxu0 0.0
        %904 = vmatpush1.msra.mxu0 %v395
        %905 = vmatprep.subr.mxu0 0.0
        %906 = vmatpush1.msra.mxu0 %v396
        %907 = vmatprep.subr.mxu0 0.0
        %908 = vmatpush1.msra.mxu0 %v397
        %909 = vmatprep.subr.mxu0 0.0
        %910 = vmatpush1.msra.mxu0 %v398
        %911 = vmatprep.subr.mxu0 0.0
        %912 = vmatpush1.msra.mxu0 0.0
        %913 = vmatprep.subr.mxu0 0.0
        %914 = vmatpush1.msra.mxu0 0.0
        %915 = vmatprep.subr.mxu0 0.0
        %916 = vmatpush1.msra.mxu0 0.0
        %917 = vmatprep.subr.mxu0 0.0
        %918 = vmatpush1.msra.mxu0 0.0
        %919 = vmatprep.subr.mxu0 0.0
        %920 = vmatpush1.msra.mxu0 0.0
        %921 = vmatprep.subr.mxu0 0.0
        %922 = vmatpush1.msra.mxu0 0.0
        %923 = vmatprep.subr.mxu0 0.0
        %924 = vmatpush1.msra.mxu0 0.0
        %925 = vmatprep.subr.mxu0 0.0
        %926 = vmatpush1.msra.mxu0 0.0
        %927 = vmatprep.subr.mxu0 0.0
        %928 = vmatpush1.msra.mxu0 0.0
        %929 = vmatprep.subr.mxu0 0.0
        %930 = vmatpush1.msra.mxu0 0.0
        %931 = vmatprep.subr.mxu0 0.0
        %932 = vmatpush1.msra.mxu0 0.0
        %933 = vmatprep.subr.mxu0 0.0
        %934 = vmatpush1.msra.mxu0 0.0
        %935 = vmatprep.subr.mxu0 0.0
        %936 = vmatpush1.msra.mxu0 0.0
        %937 = vmatprep.subr.mxu0 0.0
        %938 = vmatpush1.msra.mxu0 0.0
        %939 = vmatprep.subr.mxu0 0.0
        %940 = vmatpush1.msra.mxu0 0.0
        %941 = vmatprep.subr.mxu0 0.0
        %942 = vmatpush1.msra.mxu0 0.0
        %943 = vmatprep.subr.mxu0 0.0
        %944 = vmatpush1.msra.mxu0 0.0
        %945 = vmatprep.subr.mxu0 0.0
        %946 = vmatpush1.msra.mxu0 0.0
        %947 = vmatprep.subr.mxu0 0.0
        %948 = vmatpush1.msra.mxu0 0.0
        %949 = vmatprep.subr.mxu0 0.0
        %950 = vmatpush1.msra.mxu0 0.0
        %951 = vmatprep.subr.mxu0 0.0
        %952 = vmatpush1.msra.mxu0 0.0
        %953 = vmatprep.subr.mxu0 0.0
        %954 = vmatpush1.msra.mxu0 0.0
        %955 = vmatprep.subr.mxu0 0.0
        %956 = vmatpush1.msra.mxu0 0.0
        %957 = vmatprep.subr.mxu0 0.0
        %958 = vmatpush1.msra.mxu0 0.0
        %959 = vmatprep.subr.mxu0 0.0
        %960 = vmatpush1.msra.mxu0 0.0
        %961 = vmatprep.subr.mxu0 0.0
        %962 = vmatpush1.msra.mxu0 0.0
        %963 = vmatprep.subr.mxu0 0.0
        %964 = vmatpush1.msra.mxu0 0.0
        %965 = vmatprep.subr.mxu0 0.0
        %966 = vmatpush1.msra.mxu0 0.0
        %967 = vmatprep.mubr.f32.mxu0 0.0
        %968 = vmatmul.mubr.f32.gmra.mrb[0].mxu0 %v901
        %v969 = vpop.f32.mrb[0].mxu0
        %v970 = vadd.f32 0.0, %v969
        %v971 = vpop.f32.mrb[0].mxu0
        %972 = vdwg.mxu0
        %s973 = scalar_lea.vmem %s311, 40 [#allocation2]
        %v974 = vld [vmem:[%s973] sm:$0xff]
        %v975 = vmax.f32 %v974, 1e-16
        %v976 = vmax.f32 %v970, 1e-16
        %v977 = vmul.f32 %v975, %v976
        %v978 = vsel %vm401, %v977, 0.0
        %979 = vadd.xlane.f32.xlu0 %v978
        %v980 = vpop.xlane.xlu0 %979
        %v981 = vlog2.pop %v980
        %v982 = vmul.f32 %v981, 0.6931472
        %v983 = vadd.f32 %v884, %v982
        %v984 = vrcp.pop %v980
        %v985 = vmul.f32 %v980, %v984
        %v986 = vsub.f32 2.0, %v985
        %v987 = vmul.f32 %v984, %v986
        %v988 = vmul.f32 %v977, %v987
        %v989 = vlog2.pop %v977
        %v990 = vmul.f32 %v989, 0.6931472
        %v991 = vsub.f32 %v990, %v982
        %s992 = scalar_lea.vmem %s357, 40 [#allocation7]
        %993 = vst.msk [vmem:[%s992] sm:$0xff] %vm401, %v991
        %995 = vrot.lane.b32.xlu0 %v983, 32
        %v996 = vpop.permute.xlu0 %995
        %998 = vst.msk [vmem:[%s992] sm:$0xff] %vm502, %v996
        %v1000 = vsel %vm401, %v988, 0
        %1002 = vmatprep.subr.mxu0 0.0
        %1003 = vmatpush1.msra.mxu0 %v395
        %1004 = vmatprep.subr.mxu0 0.0
        %1005 = vmatpush1.msra.mxu0 %v396
        %1006 = vmatprep.subr.mxu0 0.0
        %1007 = vmatpush1.msra.mxu0 %v397
        %1008 = vmatprep.subr.mxu0 0.0
        %1009 = vmatpush1.msra.mxu0 %v398
        %1010 = vmatprep.subr.mxu0 0.0
        %1011 = vmatpush1.msra.mxu0 0.0
        %1012 = vmatprep.subr.mxu0 0.0
        %1013 = vmatpush1.msra.mxu0 0.0
        %1014 = vmatprep.subr.mxu0 0.0
        %1015 = vmatpush1.msra.mxu0 0.0
        %1016 = vmatprep.subr.mxu0 0.0
        %1017 = vmatpush1.msra.mxu0 0.0
        %1018 = vmatprep.subr.mxu0 0.0
        %1019 = vmatpush1.msra.mxu0 0.0
        %1020 = vmatprep.subr.mxu0 0.0
        %1021 = vmatpush1.msra.mxu0 0.0
        %1022 = vmatprep.subr.mxu0 0.0
        %1023 = vmatpush1.msra.mxu0 0.0
        %1024 = vmatprep.subr.mxu0 0.0
        %1025 = vmatpush1.msra.mxu0 0.0
        %1026 = vmatprep.subr.mxu0 0.0
        %1027 = vmatpush1.msra.mxu0 0.0
        %1028 = vmatprep.subr.mxu0 0.0
        %1029 = vmatpush1.msra.mxu0 0.0
        %1030 = vmatprep.subr.mxu0 0.0
        %1031 = vmatpush1.msra.mxu0 0.0
        %1032 = vmatprep.subr.mxu0 0.0
        %1033 = vmatpush1.msra.mxu0 0.0
        %1034 = vmatprep.subr.mxu0 0.0
        %1035 = vmatpush1.msra.mxu0 0.0
        %1036 = vmatprep.subr.mxu0 0.0
        %1037 = vmatpush1.msra.mxu0 0.0
        %1038 = vmatprep.subr.mxu0 0.0
        %1039 = vmatpush1.msra.mxu0 0.0
        %1040 = vmatprep.subr.mxu0 0.0
        %1041 = vmatpush1.msra.mxu0 0.0
        %1042 = vmatprep.subr.mxu0 0.0
        %1043 = vmatpush1.msra.mxu0 0.0
        %1044 = vmatprep.subr.mxu0 0.0
        %1045 = vmatpush1.msra.mxu0 0.0
        %1046 = vmatprep.subr.mxu0 0.0
        %1047 = vmatpush1.msra.mxu0 0.0
        %1048 = vmatprep.subr.mxu0 0.0
        %1049 = vmatpush1.msra.mxu0 0.0
        %1050 = vmatprep.subr.mxu0 0.0
        %1051 = vmatpush1.msra.mxu0 0.0
        %1052 = vmatprep.subr.mxu0 0.0
        %1053 = vmatpush1.msra.mxu0 0.0
        %1054 = vmatprep.subr.mxu0 0.0
        %1055 = vmatpush1.msra.mxu0 0.0
        %1056 = vmatprep.subr.mxu0 0.0
        %1057 = vmatpush1.msra.mxu0 0.0
        %1058 = vmatprep.subr.mxu0 0.0
        %1059 = vmatpush1.msra.mxu0 0.0
        %1060 = vmatprep.subr.mxu0 0.0
        %1061 = vmatpush1.msra.mxu0 0.0
        %1062 = vmatprep.subr.mxu0 0.0
        %1063 = vmatpush1.msra.mxu0 0.0
        %1064 = vmatprep.subr.mxu0 0.0
        %1065 = vmatpush1.msra.mxu0 0.0
        %1066 = vmatprep.mubr.f32.mxu0 0.0
        %1067 = vmatmul.mubr.f32.gmra.mrb[0].mxu0 %v1000
        %v1068 = vpop.f32.mrb[0].mxu0
        %v1069 = vadd.f32 0.0, %v1068
        %v1070 = vpop.f32.mrb[0].mxu0
        %1071 = vdwg.mxu0
        %s1072 = scalar_lea.vmem %s311, 48 [#allocation2]
        %v1073 = vld [vmem:[%s1072] sm:$0xff]
        %v1074 = vmax.f32 %v1073, 1e-16
        %v1075 = vmax.f32 %v1069, 1e-16
        %v1076 = vmul.f32 %v1074, %v1075
        %v1077 = vsel %vm401, %v1076, 0.0
        %1078 = vadd.xlane.f32.xlu0 %v1077
        %v1079 = vpop.xlane.xlu0 %1078
        %v1080 = vlog2.pop %v1079
        %v1081 = vmul.f32 %v1080, 0.6931472
        %v1082 = vadd.f32 %v983, %v1081
        %v1083 = vrcp.pop %v1079
        %v1084 = vmul.f32 %v1079, %v1083
        %v1085 = vsub.f32 2.0, %v1084
        %v1086 = vmul.f32 %v1083, %v1085
        %v1087 = vmul.f32 %v1076, %v1086
        %v1088 = vlog2.pop %v1076
        %v1089 = vmul.f32 %v1088, 0.6931472
        %v1090 = vsub.f32 %v1089, %v1081
        %s1091 = scalar_lea.vmem %s357, 48 [#allocation7]
        %1092 = vst.msk [vmem:[%s1091] sm:$0xff] %vm401, %v1090
        %1094 = vrot.lane.b32.xlu0 %v1082, 32
        %v1095 = vpop.permute.xlu0 %1094
        %1097 = vst.msk [vmem:[%s1091] sm:$0xff] %vm502, %v1095
        %v1099 = vsel %vm401, %v1087, 0
        %1101 = vmatprep.subr.mxu0 0.0
        %1102 = vmatpush1.msra.mxu0 %v395
        %1103 = vmatprep.subr.mxu0 0.0
        %1104 = vmatpush1.msra.mxu0 %v396
        %1105 = vmatprep.subr.mxu0 0.0
        %1106 = vmatpush1.msra.mxu0 %v397
        %1107 = vmatprep.subr.mxu0 0.0
        %1108 = vmatpush1.msra.mxu0 %v398
        %1109 = vmatprep.subr.mxu0 0.0
        %1110 = vmatpush1.msra.mxu0 0.0
        %1111 = vmatprep.subr.mxu0 0.0
        %1112 = vmatpush1.msra.mxu0 0.0
        %1113 = vmatprep.subr.mxu0 0.0
        %1114 = vmatpush1.msra.mxu0 0.0
        %1115 = vmatprep.subr.mxu0 0.0
        %1116 = vmatpush1.msra.mxu0 0.0
        %1117 = vmatprep.subr.mxu0 0.0
        %1118 = vmatpush1.msra.mxu0 0.0
        %1119 = vmatprep.subr.mxu0 0.0
        %1120 = vmatpush1.msra.mxu0 0.0
        %1121 = vmatprep.subr.mxu0 0.0
        %1122 = vmatpush1.msra.mxu0 0.0
        %1123 = vmatprep.subr.mxu0 0.0
        %1124 = vmatpush1.msra.mxu0 0.0
        %1125 = vmatprep.subr.mxu0 0.0
        %1126 = vmatpush1.msra.mxu0 0.0
        %1127 = vmatprep.subr.mxu0 0.0
        %1128 = vmatpush1.msra.mxu0 0.0
        %1129 = vmatprep.subr.mxu0 0.0
        %1130 = vmatpush1.msra.mxu0 0.0
        %1131 = vmatprep.subr.mxu0 0.0
        %1132 = vmatpush1.msra.mxu0 0.0
        %1133 = vmatprep.subr.mxu0 0.0
        %1134 = vmatpush1.msra.mxu0 0.0
        %1135 = vmatprep.subr.mxu0 0.0
        %1136 = vmatpush1.msra.mxu0 0.0
        %1137 = vmatprep.subr.mxu0 0.0
        %1138 = vmatpush1.msra.mxu0 0.0
        %1139 = vmatprep.subr.mxu0 0.0
        %1140 = vmatpush1.msra.mxu0 0.0
        %1141 = vmatprep.subr.mxu0 0.0
        %1142 = vmatpush1.msra.mxu0 0.0
        %1143 = vmatprep.subr.mxu0 0.0
        %1144 = vmatpush1.msra.mxu0 0.0
        %1145 = vmatprep.subr.mxu0 0.0
        %1146 = vmatpush1.msra.mxu0 0.0
        %1147 = vmatprep.subr.mxu0 0.0
        %1148 = vmatpush1.msra.mxu0 0.0
        %1149 = vmatprep.subr.mxu0 0.0
        %1150 = vmatpush1.msra.mxu0 0.0
        %1151 = vmatprep.subr.mxu0 0.0
        %1152 = vmatpush1.msra.mxu0 0.0
        %1153 = vmatprep.subr.mxu0 0.0
        %1154 = vmatpush1.msra.mxu0 0.0
        %1155 = vmatprep.subr.mxu0 0.0
        %1156 = vmatpush1.msra.mxu0 0.0
        %1157 = vmatprep.subr.mxu0 0.0
        %1158 = vmatpush1.msra.mxu0 0.0
        %1159 = vmatprep.subr.mxu0 0.0
        %1160 = vmatpush1.msra.mxu0 0.0
        %1161 = vmatprep.subr.mxu0 0.0
        %1162 = vmatpush1.msra.mxu0 0.0
        %1163 = vmatprep.subr.mxu0 0.0
        %1164 = vmatpush1.msra.mxu0 0.0
        %1165 = vmatprep.mubr.f32.mxu0 0.0
        %1166 = vmatmul.mubr.f32.gmra.mrb[0].mxu0 %v1099
        %v1167 = vpop.f32.mrb[0].mxu0
        %v1168 = vadd.f32 0.0, %v1167
        %v1169 = vpop.f32.mrb[0].mxu0
        %1170 = vdwg.mxu0
        %s1171 = scalar_lea.vmem %s311, 56 [#allocation2]
        %v1172 = vld [vmem:[%s1171] sm:$0xff]
        %v1173 = vmax.f32 %v1172, 1e-16
        %v1174 = vmax.f32 %v1168, 1e-16
        %v1175 = vmul.f32 %v1173, %v1174
        %v1176 = vsel %vm401, %v1175, 0.0
        %1177 = vadd.xlane.f32.xlu0 %v1176
        %v1178 = vpop.xlane.xlu0 %1177
        %v1179 = vlog2.pop %v1178
        %v1180 = vmul.f32 %v1179, 0.6931472
        %v1181 = vadd.f32 %v1082, %v1180
        %v1182 = vrcp.pop %v1178
        %v1183 = vmul.f32 %v1178, %v1182
        %v1184 = vsub.f32 2.0, %v1183
        %v1185 = vmul.f32 %v1182, %v1184
        %v1186 = vmul.f32 %v1175, %v1185
        %v1187 = vlog2.pop %v1175
        %v1188 = vmul.f32 %v1187, 0.6931472
        %v1189 = vsub.f32 %v1188, %v1180
        %s1190 = scalar_lea.vmem %s357, 56 [#allocation7]
        %1191 = vst.msk [vmem:[%s1190] sm:$0xff] %vm401, %v1189
        %1193 = vrot.lane.b32.xlu0 %v1181, 32
        %v1194 = vpop.permute.xlu0 %1193
        %1196 = vst.msk [vmem:[%s1190] sm:$0xff] %vm502, %v1194
        %1197 = vst.msk [vmem:[%s364] sm:$0xff] %vm401, %v1186
        %vm1198 = vcmask 7168
        %1199 = vst.msk [vmem:[%s384] sm:$0xff] %vm1198, %v1181
        %s1200 = sand.u32 %s158, 1
        %s1201 = scalar_lea.sflag [#allocation4], %s1200
        %s1202 = sand.u32 %s158, 1
        %s1203 = smul.addr %s1202, 64
        %s1204 = scalar_lea.vmem [#allocation7], %s1203
        %s1205 = sand.u32 %s184, 1
        %s1206 = scalar_lea.sflag [#allocation9], %s1205
        %s1207 = sand.u32 %s184, 1
        %s1208 = smul.addr %s1207, 8
        %s1209 = scalar_lea.vmem [#allocation8], %s1208
        %p1210 = scmp.lt.s32.totalorder %s34, 1
        %s1211 = scalar_select %p1210, %s34, 1
        %s1212 = smul.addr %s1211, 8
        %s1213 = scalar_lea.vmem %s6, %s1212
        // Predicated region
        $region49: #{tpu_custom_call.1} parent=35 // pred_check
          %p1214 = pneg %p168
        $region50: #{tpu_custom_call.1} parent=35 // pred_check_branch
          %1216 = sbr.rel (%p1214) target = $region52
        $region51: #{tpu_custom_call.1} parent=35 // pred_region
          %s1217 = smul.u32 8, %s35
          %s1219 = ssub.s32 1024, 1024
          %1220 = vsyncadd %s1201, %s1219
          %s1221 = smul.addr %s1217, 2
          %s1222 = sadd.s32 %s34, %s1221
          %s1223 = smul.addr %s1222, 128
          %s1224 = scalar_lea.hbm %s4, %s1223
          %s1225 = sshll.u32 %s1204, 4
          %s1226 = int_to_ptr.vmem [resolvable:$true] %s1225
          %1231 = dma.vmem_to_hbm [thread:$0]  %s1226, 1024, %s1224, %s1201, 128, 256, 8
        $region52: #{tpu_custom_call.1} parent=35 // pred_fallthru
          _
        // Predicated region
        $region53: #{tpu_custom_call.1} parent=35 // pred_check
          %p1232 = pneg %p194
        $region54: #{tpu_custom_call.1} parent=35 // pred_check_branch
          %1234 = sbr.rel (%p1232) target = $region56
        $region55: #{tpu_custom_call.1} parent=35 // pred_region
          %s1236 = ssub.s32 128, 128
          %1237 = vsyncadd %s1206, %s1236
          %s1238 = smul.addr %s34, 128
          %s1239 = scalar_lea.hbm %s5, %s1238
          %s1241 = sshll.u32 %s1209, 4
          %s1242 = int_to_ptr.vmem [resolvable:$true] %s1241
          %1244 = dma.vmem_to_hbm [thread:$0]  %s1242, 128, %s1239, %s1206
        $region56: #{tpu_custom_call.1} parent=35 // pred_fallthru
          _
        // Predicated region
        $region57: #{tpu_custom_call.1} parent=35 // pred_check
          %p1245 = pneg %p220
        $region58: #{tpu_custom_call.1} parent=35 // pred_check_branch
          %1247 = sbr.rel (%p1245) target = $region60
        $region59: #{tpu_custom_call.1} parent=35 // pred_region
          _
        $region60: #{tpu_custom_call.1} parent=35 // pred_fallthru
          _
      $region36: #{tpu_custom_call.1} parent=5 // pred_fallthru
        _
      %p1248 = scmp.le.s32.totalorder 2, %s25
      // Predicated region
      $region61: #{tpu_custom_call.1} parent=5 // pred_check
        %p1249 = pneg %p1248
      $region62: #{tpu_custom_call.1} parent=5 // pred_check_branch
        %1251 = sbr.rel (%p1249) target = $region64
      $region63: #{tpu_custom_call.1} parent=5 // pred_region
        %s1252 = ssub.s32 %s25, 2
        // Predicated region
        $region65: #{tpu_custom_call.1} parent=63 // pred_check
          %p1253 = pneg %p174
        $region66: #{tpu_custom_call.1} parent=63 // pred_check_branch
          %1255 = sbr.rel (%p1253) target = $region68
        $region67: #{tpu_custom_call.1} parent=63 // pred_region
          %s1256 = sand.u32 %s159, 1
          %s1257 = scalar_lea.sflag [#allocation4], %s1256
          %s1258 = sand.u32 %s159, 1
          %s1259 = smul.addr %s1258, 64
          %s1260 = scalar_lea.vmem [#allocation7], %s1259
          %1261 = dma.done %s1257, 1024
        $region68: #{tpu_custom_call.1} parent=63 // pred_fallthru
          _
        // Predicated region
        $region69: #{tpu_custom_call.1} parent=63 // pred_check
          %p1262 = pneg %p200
        $region70: #{tpu_custom_call.1} parent=63 // pred_check_branch
          %1264 = sbr.rel (%p1262) target = $region72
        $region71: #{tpu_custom_call.1} parent=63 // pred_region
          %s1265 = sand.u32 %s185, 1
          %s1266 = scalar_lea.sflag [#allocation9], %s1265
          %s1267 = sand.u32 %s185, 1
          %s1268 = smul.addr %s1267, 8
          %s1269 = scalar_lea.vmem [#allocation8], %s1268
          %1270 = dma.done %s1266, 128
        $region72: #{tpu_custom_call.1} parent=63 // pred_fallthru
          _
        // Predicated region
        $region73: #{tpu_custom_call.1} parent=63 // pred_check
          %p1271 = pneg %p226
        $region74: #{tpu_custom_call.1} parent=63 // pred_check_branch
          %1273 = sbr.rel (%p1271) target = $region76
        $region75: #{tpu_custom_call.1} parent=63 // pred_region
          %p1274 = scmp.lt.s32.totalorder %s36, 1
          %s1275 = scalar_select %p1274, %s36, 1
          %s1276 = smul.addr %s1275, 8
          %s1277 = scalar_lea.vmem %s6, %s1276
        $region76: #{tpu_custom_call.1} parent=63 // pred_fallthru
          _
      $region64: #{tpu_custom_call.1} parent=5 // pred_fallthru
        _
    $region6: #{tpu_custom_call.1} parent=1 // loop_footer
      %s29 = sadd.s32 1, %s25
    $region7: #{tpu_custom_call.1} parent=1 // loop_footer_branch
      %24 = sbr.rel target = $region3
    $region8: #{tpu_custom_call.1} parent=1 // loop_exit
      _
    %1278 = vsyncpa [#allocation3], 1
    %s1279 = scalar_lea.sflag [#allocation3], 1
    %1280 = vsyncpa %s1279, 1
    %1281 = vsyncpa [#allocation6], 1
    %s1282 = scalar_lea.sflag [#allocation6], 1
    %1283 = vsyncpa %s1282, 1
    %1284 = vsyncpa [#allocation4], 1
    %s1285 = scalar_lea.sflag [#allocation4], 1
    %1286 = vsyncpa %s1285, 1
    %1287 = vsyncpa [#allocation9], 1
    %s1288 = scalar_lea.sflag [#allocation9], 1
    %1289 = vsyncpa %s1288, 1

</llo_original>
